<compile_context>
chip_gen: v6e
topology: v6e:2x2x1
jax: 0.10.0
libtpu: 0.0.40
codegen_flags: <defaults>
</compile_context>

<pallas_src>
import functools

import jax
import jax.numpy as jnp
import numpy as np
from jax.experimental import pallas as pl
from jax.experimental.pallas import tpu as pltpu

LN_EPS = 1e-5  # nn.LayerNorm default


def _layer_norm(h, gamma, beta):
    # Single-pass statistics: one sweep over h, var = E[h^2] - mu^2.
    mu = jnp.mean(h, axis=-1, keepdims=True)
    ms = jnp.mean(h * h, axis=-1, keepdims=True)
    var = ms - mu * mu
    return (h - mu) * jax.lax.rsqrt(var + LN_EPS) * gamma + beta


def _shift_rows(x, d):
    """y[t] = x[t + d] with zero padding outside [0, T).  Pure value op (no ref writes)."""
    if d == 0:
        return x
    z = jnp.zeros((abs(d), x.shape[1]), x.dtype)
    if d > 0:
        return jnp.concatenate([x[d:, :], z], axis=0)
    return jnp.concatenate([z, x[:d, :]], axis=0)


def _conv_relu_ln(x, wflat_ref, b_ref, g_ref, be_ref, *, K, P):
    """Fused Conv1d(K, pad=P) -> ReLU -> LayerNorm on a (T, C_in) row.

    The K time-shifted inputs are concatenated along lanes into (T, K*C_in) and hit the
    MXU once against the tap-major flattened weight (K*C_in, F), with f32 accumulation.
    """
    taps = [_shift_rows(x, k - P) for k in range(K)]
    xcat = jnp.concatenate(taps, axis=-1) if K > 1 else taps[0]     # (T, K*C_in)
    h = jnp.dot(xcat, wflat_ref[...], preferred_element_type=jnp.float32)
    h = h + b_ref[...]                                              # (T, F) + (1, F)
    h = jnp.maximum(h, 0.0)
    return _layer_norm(h, g_ref[...], be_ref[...])


def _duration_kernel(x_ref, mask_ref,
                     w1_ref, b1_ref, g1_ref, be1_ref,
                     w2_ref, b2_ref, g2_ref, be2_ref,
                     wp_ref, bp_ref,
                     out_ref, *, K, P1, P2):
    x = x_ref[0]                                                    # (T, C), bf16/f32

    # ---- Conv1 ('same' padding) + ReLU + LayerNorm ----
    h1 = _conv_relu_ln(x, w1_ref, b1_ref, g1_ref, be1_ref, K=K, P=P1)
    # TODO(synk): nn.Dropout is identity at inference; no RNG dropout is applied.

    # ---- Conv2 (padding=1) + ReLU + LayerNorm ----
    h2 = _conv_relu_ln(h1.astype(x.dtype), w2_ref, b2_ref, g2_ref, be2_ref, K=K, P=P2)

    # ---- Linear proj to 1 channel (VPU mul + lane reduce), squeeze, masked_fill ----
    o = jnp.sum(h2 * wp_ref[...], axis=-1) + bp_ref[0, 0]           # (T,)
    m = mask_ref[0, 0, :]                                           # (T,) int32; nonzero == masked
    out_ref[0, 0, :] = jnp.where(m != 0, 0.0, o)


def duration_predictor(x, mask, params, *, compute_dtype=jnp.bfloat16):
    """x: (B, T, d_model); mask: (B, T) bool/int or None; returns (B, T) float32."""
    B, T, C = x.shape
    w1 = params["w1"]
    K, _, F = w1.shape
    P1 = (K - 1) // 2
    P2 = 1  # the module's second Conv uses padding=1
    assert K % 2 == 1, "conv1 'same' padding (K-1)//2 assumes an odd kernel_size"
    assert K == 3, "padding=1 in the 2nd conv is length-preserving only for kernel_size=3"
    assert T > K, "time axis must exceed the conv kernel"

    cdt = jnp.dtype(compute_dtype)
    x_c = x.astype(cdt)
    # Tap-major flattened conv weights: (K, C_in, F) -> (K*C_in, F), matching the lane
    # order of the in-kernel shifted-input concat.
    w1_flat = params["w1"].reshape(K * C, F).astype(cdt)
    w2_flat = params["w2"].reshape(K * F, F).astype(cdt)
    wp_row = params["wp"].reshape(1, F).astype(jnp.float32)          # (F, 1) -> (1, F)
    bp = params["bp"].reshape(1, 1).astype(jnp.float32)

    if mask is None:
        mask_i = jnp.zeros((B, 1, T), jnp.int32)
    else:
        mask_i = mask.astype(jnp.int32).reshape(B, 1, T)

    kernel = functools.partial(_duration_kernel, K=K, P1=P1, P2=P2)

    in_specs = [
        pl.BlockSpec((1, T, C), lambda b: (b, 0, 0)),        # x, per-batch block (bf16)
        pl.BlockSpec((1, 1, T), lambda b: (b, 0, 0)),        # mask, per-batch block (int32)
        pl.BlockSpec((K * C, F), lambda b: (0, 0)),          # conv1 weights, flattened (resident)
        pl.BlockSpec((1, F), lambda b: (0, 0)),              # conv1 bias
        pl.BlockSpec((1, F), lambda b: (0, 0)),              # ln1 gamma
        pl.BlockSpec((1, F), lambda b: (0, 0)),              # ln1 beta
        pl.BlockSpec((K * F, F), lambda b: (0, 0)),          # conv2 weights, flattened (resident)
        pl.BlockSpec((1, F), lambda b: (0, 0)),              # conv2 bias
        pl.BlockSpec((1, F), lambda b: (0, 0)),              # ln2 gamma
        pl.BlockSpec((1, F), lambda b: (0, 0)),              # ln2 beta
        pl.BlockSpec((1, F), lambda b: (0, 0)),              # proj weight row
        pl.BlockSpec(memory_space=pltpu.MemorySpace.SMEM),   # proj bias scalar in SMEM
    ]
    out_specs = pl.BlockSpec((1, 1, T), lambda b: (b, 0, 0))

    # Whole-row working-set estimate -> raise the scoped-VMEM limit only when needed.
    vmem_est = (2 * T * C * cdt.itemsize                     # x block (double-buffered)
                + 2 * T * K * C * cdt.itemsize               # shifted taps + lane concat
                + 4 * T * F * 4                              # live f32 h / h2 / matmul result
                + (K * C * F + K * F * F) * cdt.itemsize     # resident conv weights
                + 16 * F * 4 + 8 * T * 4)
    vmem_limit = None
    if vmem_est > 16 * 1024 * 1024:
        vmem_limit = int(min(2 * vmem_est, 96 * 1024 * 1024))

    out = pl.pallas_call(
        kernel,
        out_shape=jax.ShapeDtypeStruct((B, 1, T), jnp.float32),
        grid=(B,),
        in_specs=in_specs,
        out_specs=out_specs,
        compiler_params=pltpu.CompilerParams(
            dimension_semantics=("parallel",),   # batch rows are independent (megacore)
            vmem_limit_bytes=vmem_limit),
    )(x_c, mask_i,
      w1_flat, params["b1"], params["g1"], params["be1"],
      w2_flat, params["b2"], params["g2"], params["be2"],
      wp_row, bp)
    return out.reshape(B, T)


def init_params(key, d_model, n_filter, kernel_size):
    ks = jax.random.split(key, 10)
    return {
        "w1": 0.1 * jax.random.normal(ks[0], (kernel_size, d_model, n_filter), jnp.float32),
        "b1": 0.1 * jax.random.normal(ks[1], (1, n_filter), jnp.float32),
        "g1": 1.0 + 0.05 * jax.random.normal(ks[2], (1, n_filter), jnp.float32),
        "be1": 0.05 * jax.random.normal(ks[3], (1, n_filter), jnp.float32),
        "w2": 0.1 * jax.random.normal(ks[4], (kernel_size, n_filter, n_filter), jnp.float32),
        "b2": 0.1 * jax.random.normal(ks[5], (1, n_filter), jnp.float32),
        "g2": 1.0 + 0.05 * jax.random.normal(ks[6], (1, n_filter), jnp.float32),
        "be2": 0.05 * jax.random.normal(ks[7], (1, n_filter), jnp.float32),
        "wp": 0.1 * jax.random.normal(ks[8], (n_filter, 1), jnp.float32),
        "bp": 0.1 * jax.random.normal(ks[9], (1, 1), jnp.float32),
    }


def reference(x, mask, params):
    """Pure-JAX f32 reference matching the PyTorch forward (eval mode)."""
    K = params["w1"].shape[0]
    P1 = (K - 1) // 2
    P2 = 1
    hp_prec = jax.lax.Precision.HIGHEST

    def conv(h, w, b, pad):
        T = h.shape[1]
        hpd = jnp.pad(h, ((0, 0), (pad, pad), (0, 0)))
        out = sum(jnp.einsum("btc,cf->btf", hpd[:, k:k + T, :], w[k], precision=hp_prec)
                  for k in range(K))
        return out + b

    def ln(h, g, be):
        mu = h.mean(-1, keepdims=True)
        var = ((h - mu) ** 2).mean(-1, keepdims=True)
        return (h - mu) * jax.lax.rsqrt(var + LN_EPS) * g + be

    h = jax.nn.relu(conv(x, params["w1"], params["b1"], P1))
    h = ln(h, params["g1"], params["be1"])
    h = jax.nn.relu(conv(h, params["w2"], params["b2"], P2))
    h = ln(h, params["g2"], params["be2"])
    o = jnp.einsum("btf,fo->bto", h, params["wp"], precision=hp_prec)[..., 0] + params["bp"][0, 0]
    if mask is not None:
        o = jnp.where(mask, 0.0, o)
    return o


if __name__ == "__main__":
    # Small but lane-dense shapes: 128 channels fill the 128-lane vregs / MXU columns.
    d_model, n_filter, kernel_size, dropout_p = 128, 128, 3, 0.1
    B, T = 2, 16

    key = jax.random.PRNGKey(0)
    kx, kp = jax.random.split(key)
    params = init_params(kp, d_model, n_filter, kernel_size)
    x = jax.random.normal(kx, (B, T, d_model), jnp.float32)

    lengths = jnp.array([11, 16])
    mask = jnp.arange(T)[None, :] >= lengths[:, None]   # True == padded position -> 0.0

    ref = reference(x, mask, params)

    # f32 compute path: tight structural check (conv taps, LN, masking).
    out_f32 = duration_predictor(x, mask, params, compute_dtype=jnp.float32)
    jax.block_until_ready(out_f32)
    assert out_f32.shape == (B, T)
    np.testing.assert_allclose(np.asarray(out_f32), np.asarray(ref), atol=1e-3, rtol=1e-3)

    # Default fast path: bf16 operands with f32 MXU accumulation (tolerance covers bf16 rounding).
    out_bf16 = duration_predictor(x, mask, params)
    jax.block_until_ready(out_bf16)
    np.testing.assert_allclose(np.asarray(out_bf16), np.asarray(ref), atol=5e-2, rtol=5e-2)

    # mask=None branch.
    out_nomask = duration_predictor(x, None, params, compute_dtype=jnp.float32)
    jax.block_until_ready(out_nomask)
    np.testing.assert_allclose(np.asarray(out_nomask), np.asarray(reference(x, None, params)),
                               atol=1e-3, rtol=1e-3)

    print("KERNEL_OK")
</pallas_src>

<mosaic_0001>
module attributes {stable_mosaic.version = 11 : i64} {
  func.func @_duration_kernel(%arg0: i32, %arg1: memref<1x16x128xf32, #tpu.memory_space<vmem>>, %arg2: memref<1x1x16xi32, #tpu.memory_space<vmem>>, %arg3: memref<384x128xf32, #tpu.memory_space<vmem>>, %arg4: memref<1x128xf32, #tpu.memory_space<vmem>>, %arg5: memref<1x128xf32, #tpu.memory_space<vmem>>, %arg6: memref<1x128xf32, #tpu.memory_space<vmem>>, %arg7: memref<384x128xf32, #tpu.memory_space<vmem>>, %arg8: memref<1x128xf32, #tpu.memory_space<vmem>>, %arg9: memref<1x128xf32, #tpu.memory_space<vmem>>, %arg10: memref<1x128xf32, #tpu.memory_space<vmem>>, %arg11: memref<1x128xf32, #tpu.memory_space<vmem>>, %arg12: memref<1x1xf32, #tpu.memory_space<smem>>, %arg13: memref<1x1x16xf32, #tpu.memory_space<vmem>>) attributes {dimension_semantics = [#tpu.dimension_semantics<parallel>], iteration_bounds = array<i64: 2>, scalar_prefetch = 0 : i64, scratch_operands = 0 : i64, tpu.core_type = #tpu.core_type<tc>, window_params = [{transform_indices = @transform_0, window_bounds = array<i64: 1, 16, 128>}, {transform_indices = @transform_1, window_bounds = array<i64: 1, 1, 16>}, {pipeline_mode = #tpu.pipeline_mode<synchronous>, transform_indices = @transform_2, window_bounds = array<i64: 384, 128>}, {pipeline_mode = #tpu.pipeline_mode<synchronous>, transform_indices = @transform_3, window_bounds = array<i64: 1, 128>}, {pipeline_mode = #tpu.pipeline_mode<synchronous>, transform_indices = @transform_4, window_bounds = array<i64: 1, 128>}, {pipeline_mode = #tpu.pipeline_mode<synchronous>, transform_indices = @transform_5, window_bounds = array<i64: 1, 128>}, {pipeline_mode = #tpu.pipeline_mode<synchronous>, transform_indices = @transform_6, window_bounds = array<i64: 384, 128>}, {pipeline_mode = #tpu.pipeline_mode<synchronous>, transform_indices = @transform_7, window_bounds = array<i64: 1, 128>}, {pipeline_mode = #tpu.pipeline_mode<synchronous>, transform_indices = @transform_8, window_bounds = array<i64: 1, 128>}, {pipeline_mode = #tpu.pipeline_mode<synchronous>, transform_indices = @transform_9, window_bounds = array<i64: 1, 128>}, {pipeline_mode = #tpu.pipeline_mode<synchronous>, transform_indices = @transform_10, window_bounds = array<i64: 1, 128>}, {transform_indices = @transform_11, window_bounds = array<i64: 1, 1>}, {transform_indices = @transform_12, window_bounds = array<i64: 1, 1, 16>}]} {
    %c0 = arith.constant 0 : index
    %c0_0 = arith.constant 0 : index
    %c0_1 = arith.constant 0 : index
    %0 = vector.load %arg1[%c0, %c0_0, %c0_1] : memref<1x16x128xf32, #tpu.memory_space<vmem>>, vector<1x16x128xf32>
    %1 = vector.shape_cast %0 : vector<1x16x128xf32> to vector<16x128xf32>
    %cst = arith.constant 0.000000e+00 : f32
    %2 = vector.broadcast %cst : f32 to vector<1x128xf32>
    %3 = vector.extract_strided_slice %1 {offsets = [0, 0], sizes = [15, 128], strides = [1, 1]} : vector<16x128xf32> to vector<15x128xf32>
    %4 = tpu.concatenate %2, %3 in 0 : vector<1x128xf32>, vector<15x128xf32> -> vector<16x128xf32>
    %cst_2 = arith.constant 0.000000e+00 : f32
    %5 = vector.broadcast %cst_2 : f32 to vector<1x128xf32>
    %6 = vector.extract_strided_slice %1 {offsets = [1, 0], sizes = [15, 128], strides = [1, 1]} : vector<16x128xf32> to vector<15x128xf32>
    %7 = tpu.concatenate %6, %5 in 0 : vector<15x128xf32>, vector<1x128xf32> -> vector<16x128xf32>
    %8 = tpu.concatenate %4, %1, %7 in 1 : vector<16x128xf32>, vector<16x128xf32>, vector<16x128xf32> -> vector<16x384xf32>
    %c0_3 = arith.constant 0 : index
    %c0_4 = arith.constant 0 : index
    %9 = vector.load %arg3[%c0_3, %c0_4] : memref<384x128xf32, #tpu.memory_space<vmem>>, vector<384x128xf32>
    %cst_5 = arith.constant dense<0.000000e+00> : vector<16x128xf32>
    %10 = tpu.matmul %8, %9, %cst_5 {dimension_numbers = #tpu.dot_dimension_numbers<[1], [0], [0], [1], [0, 0, 1, 1], [], []>} : vector<16x384xf32>, vector<384x128xf32>, vector<16x128xf32> -> vector<16x128xf32>
    %c0_6 = arith.constant 0 : index
    %c0_7 = arith.constant 0 : index
    %11 = vector.load %arg4[%c0_6, %c0_7] : memref<1x128xf32, #tpu.memory_space<vmem>>, vector<1x128xf32>
    %12 = vector.broadcast %11 : vector<1x128xf32> to vector<16x128xf32>
    %13 = arith.addf %10, %12 : vector<16x128xf32>
    %cst_8 = arith.constant 0.000000e+00 : f32
    %14 = vector.broadcast %cst_8 : f32 to vector<16x128xf32>
    %15 = arith.maximumf %13, %14 : vector<16x128xf32>
    %c0_9 = arith.constant 0 : index
    %c0_10 = arith.constant 0 : index
    %16 = vector.load %arg5[%c0_9, %c0_10] : memref<1x128xf32, #tpu.memory_space<vmem>>, vector<1x128xf32>
    %c0_11 = arith.constant 0 : index
    %c0_12 = arith.constant 0 : index
    %17 = vector.load %arg6[%c0_11, %c0_12] : memref<1x128xf32, #tpu.memory_space<vmem>>, vector<1x128xf32>
    %cst_13 = arith.constant dense<0.000000e+00> : vector<16xf32>
    %18 = vector.multi_reduction <add>, %15, %cst_13 [1] : vector<16x128xf32> to vector<16xf32>
    %19 = vector.shape_cast %18 : vector<16xf32> to vector<16x1xf32>
    %cst_14 = arith.constant 1.280000e+02 : f32
    %20 = vector.broadcast %cst_14 : f32 to vector<16x1xf32>
    %21 = arith.divf %19, %20 : vector<16x1xf32>
    %22 = arith.mulf %15, %15 : vector<16x128xf32>
    %cst_15 = arith.constant dense<0.000000e+00> : vector<16xf32>
    %23 = vector.multi_reduction <add>, %22, %cst_15 [1] : vector<16x128xf32> to vector<16xf32>
    %24 = vector.shape_cast %23 : vector<16xf32> to vector<16x1xf32>
    %cst_16 = arith.constant 1.280000e+02 : f32
    %25 = vector.broadcast %cst_16 : f32 to vector<16x1xf32>
    %26 = arith.divf %24, %25 : vector<16x1xf32>
    %27 = arith.mulf %21, %21 : vector<16x1xf32>
    %28 = arith.subf %26, %27 : vector<16x1xf32>
    %29 = vector.broadcast %21 : vector<16x1xf32> to vector<16x128xf32>
    %30 = arith.subf %15, %29 : vector<16x128xf32>
    %cst_17 = arith.constant 9.99999974E-6 : f32
    %31 = vector.broadcast %cst_17 : f32 to vector<16x1xf32>
    %32 = arith.addf %28, %31 : vector<16x1xf32>
    %33 = math.rsqrt %32 : vector<16x1xf32>
    %34 = vector.broadcast %33 : vector<16x1xf32> to vector<16x128xf32>
    %35 = arith.mulf %30, %34 : vector<16x128xf32>
    %36 = vector.broadcast %16 : vector<1x128xf32> to vector<16x128xf32>
    %37 = arith.mulf %35, %36 : vector<16x128xf32>
    %38 = vector.broadcast %17 : vector<1x128xf32> to vector<16x128xf32>
    %39 = arith.addf %37, %38 : vector<16x128xf32>
    %cst_18 = arith.constant 0.000000e+00 : f32
    %40 = vector.broadcast %cst_18 : f32 to vector<1x128xf32>
    %41 = vector.extract_strided_slice %39 {offsets = [0, 0], sizes = [15, 128], strides = [1, 1]} : vector<16x128xf32> to vector<15x128xf32>
    %42 = tpu.concatenate %40, %41 in 0 : vector<1x128xf32>, vector<15x128xf32> -> vector<16x128xf32>
    %cst_19 = arith.constant 0.000000e+00 : f32
    %43 = vector.broadcast %cst_19 : f32 to vector<1x128xf32>
    %44 = vector.extract_strided_slice %39 {offsets = [1, 0], sizes = [15, 128], strides = [1, 1]} : vector<16x128xf32> to vector<15x128xf32>
    %45 = tpu.concatenate %44, %43 in 0 : vector<15x128xf32>, vector<1x128xf32> -> vector<16x128xf32>
    %46 = tpu.concatenate %42, %39, %45 in 1 : vector<16x128xf32>, vector<16x128xf32>, vector<16x128xf32> -> vector<16x384xf32>
    %c0_20 = arith.constant 0 : index
    %c0_21 = arith.constant 0 : index
    %47 = vector.load %arg7[%c0_20, %c0_21] : memref<384x128xf32, #tpu.memory_space<vmem>>, vector<384x128xf32>
    %cst_22 = arith.constant dense<0.000000e+00> : vector<16x128xf32>
    %48 = tpu.matmul %46, %47, %cst_22 {dimension_numbers = #tpu.dot_dimension_numbers<[1], [0], [0], [1], [0, 0, 1, 1], [], []>} : vector<16x384xf32>, vector<384x128xf32>, vector<16x128xf32> -> vector<16x128xf32>
    %c0_23 = arith.constant 0 : index
    %c0_24 = arith.constant 0 : index
    %49 = vector.load %arg8[%c0_23, %c0_24] : memref<1x128xf32, #tpu.memory_space<vmem>>, vector<1x128xf32>
    %50 = vector.broadcast %49 : vector<1x128xf32> to vector<16x128xf32>
    %51 = arith.addf %48, %50 : vector<16x128xf32>
    %cst_25 = arith.constant 0.000000e+00 : f32
    %52 = vector.broadcast %cst_25 : f32 to vector<16x128xf32>
    %53 = arith.maximumf %51, %52 : vector<16x128xf32>
    %c0_26 = arith.constant 0 : index
    %c0_27 = arith.constant 0 : index
    %54 = vector.load %arg9[%c0_26, %c0_27] : memref<1x128xf32, #tpu.memory_space<vmem>>, vector<1x128xf32>
    %c0_28 = arith.constant 0 : index
    %c0_29 = arith.constant 0 : index
    %55 = vector.load %arg10[%c0_28, %c0_29] : memref<1x128xf32, #tpu.memory_space<vmem>>, vector<1x128xf32>
    %cst_30 = arith.constant dense<0.000000e+00> : vector<16xf32>
    %56 = vector.multi_reduction <add>, %53, %cst_30 [1] : vector<16x128xf32> to vector<16xf32>
    %57 = vector.shape_cast %56 : vector<16xf32> to vector<16x1xf32>
    %cst_31 = arith.constant 1.280000e+02 : f32
    %58 = vector.broadcast %cst_31 : f32 to vector<16x1xf32>
    %59 = arith.divf %57, %58 : vector<16x1xf32>
    %60 = arith.mulf %53, %53 : vector<16x128xf32>
    %cst_32 = arith.constant dense<0.000000e+00> : vector<16xf32>
    %61 = vector.multi_reduction <add>, %60, %cst_32 [1] : vector<16x128xf32> to vector<16xf32>
    %62 = vector.shape_cast %61 : vector<16xf32> to vector<16x1xf32>
    %cst_33 = arith.constant 1.280000e+02 : f32
    %63 = vector.broadcast %cst_33 : f32 to vector<16x1xf32>
    %64 = arith.divf %62, %63 : vector<16x1xf32>
    %65 = arith.mulf %59, %59 : vector<16x1xf32>
    %66 = arith.subf %64, %65 : vector<16x1xf32>
    %67 = vector.broadcast %59 : vector<16x1xf32> to vector<16x128xf32>
    %68 = arith.subf %53, %67 : vector<16x128xf32>
    %cst_34 = arith.constant 9.99999974E-6 : f32
    %69 = vector.broadcast %cst_34 : f32 to vector<16x1xf32>
    %70 = arith.addf %66, %69 : vector<16x1xf32>
    %71 = math.rsqrt %70 : vector<16x1xf32>
    %72 = vector.broadcast %71 : vector<16x1xf32> to vector<16x128xf32>
    %73 = arith.mulf %68, %72 : vector<16x128xf32>
    %74 = vector.broadcast %54 : vector<1x128xf32> to vector<16x128xf32>
    %75 = arith.mulf %73, %74 : vector<16x128xf32>
    %76 = vector.broadcast %55 : vector<1x128xf32> to vector<16x128xf32>
    %77 = arith.addf %75, %76 : vector<16x128xf32>
    %c0_35 = arith.constant 0 : index
    %c0_36 = arith.constant 0 : index
    %78 = vector.load %arg11[%c0_35, %c0_36] : memref<1x128xf32, #tpu.memory_space<vmem>>, vector<1x128xf32>
    %79 = vector.broadcast %78 : vector<1x128xf32> to vector<16x128xf32>
    %80 = arith.mulf %77, %79 : vector<16x128xf32>
    %cst_37 = arith.constant dense<0.000000e+00> : vector<16xf32>
    %81 = vector.multi_reduction <add>, %80, %cst_37 [1] : vector<16x128xf32> to vector<16xf32>
    %c0_38 = arith.constant 0 : index
    %c0_39 = arith.constant 0 : index
    %82 = memref.load %arg12[%c0_38, %c0_39] : memref<1x1xf32, #tpu.memory_space<smem>>
    %83 = vector.broadcast %82 : f32 to vector<16xf32>
    %84 = arith.addf %81, %83 : vector<16xf32>
    %c0_40 = arith.constant 0 : index
    %c0_41 = arith.constant 0 : index
    %c0_42 = arith.constant 0 : index
    %85 = vector.load %arg2[%c0_40, %c0_41, %c0_42] : memref<1x1x16xi32, #tpu.memory_space<vmem>>, vector<1x1x16xi32>
    %86 = vector.shape_cast %85 : vector<1x1x16xi32> to vector<16xi32>
    %c0_i32 = arith.constant 0 : i32
    %87 = vector.broadcast %c0_i32 : i32 to vector<16xi32>
    %88 = arith.cmpi ne, %86, %87 : vector<16xi32>
    %cst_43 = arith.constant 0.000000e+00 : f32
    %89 = vector.broadcast %cst_43 : f32 to vector<16xf32>
    %90 = arith.select %88, %89, %84 : vector<16xi1>, vector<16xf32>
    %c0_44 = arith.constant 0 : index
    %c0_45 = arith.constant 0 : index
    %c0_46 = arith.constant 0 : index
    %91 = vector.load %arg13[%c0_44, %c0_45, %c0_46] : memref<1x1x16xf32, #tpu.memory_space<vmem>>, vector<1x1x16xf32>
    %92 = vector.shape_cast %91 : vector<1x1x16xf32> to vector<16xf32>
    %93 = vector.shape_cast %90 : vector<16xf32> to vector<1x1x16xf32>
    tpu.vector_store %arg13[%c0_44, %c0_45, %c0_46], %93 {strides = array<i32>} : memref<1x1x16xf32, #tpu.memory_space<vmem>>, vector<1x1x16xf32>,
    return
  }
  func.func @transform_0(%arg0: i32) -> (i32, i32, i32) {
    %c0_i32 = arith.constant 0 : i32
    %c0_i32_0 = arith.constant 0 : i32
    %c0_i32_1 = arith.constant 0 : i32
    return %arg0, %c0_i32, %c0_i32_0 : i32, i32, i32
  }
  func.func @transform_1(%arg0: i32) -> (i32, i32, i32) {
    %c0_i32 = arith.constant 0 : i32
    %c0_i32_0 = arith.constant 0 : i32
    %c0_i32_1 = arith.constant 0 : i32
    return %arg0, %c0_i32, %c0_i32_0 : i32, i32, i32
  }
  func.func @transform_2(%arg0: i32) -> (i32, i32) {
    %c0_i32 = arith.constant 0 : i32
    %c0_i32_0 = arith.constant 0 : i32
    %c0_i32_1 = arith.constant 0 : i32
    return %c0_i32, %c0_i32_0 : i32, i32
  }
  func.func @transform_3(%arg0: i32) -> (i32, i32) {
    %c0_i32 = arith.constant 0 : i32
    %c0_i32_0 = arith.constant 0 : i32
    %c0_i32_1 = arith.constant 0 : i32
    return %c0_i32, %c0_i32_0 : i32, i32
  }
  func.func @transform_4(%arg0: i32) -> (i32, i32) {
    %c0_i32 = arith.constant 0 : i32
    %c0_i32_0 = arith.constant 0 : i32
    %c0_i32_1 = arith.constant 0 : i32
    return %c0_i32, %c0_i32_0 : i32, i32
  }
  func.func @transform_5(%arg0: i32) -> (i32, i32) {
    %c0_i32 = arith.constant 0 : i32
    %c0_i32_0 = arith.constant 0 : i32
    %c0_i32_1 = arith.constant 0 : i32
    return %c0_i32, %c0_i32_0 : i32, i32
  }
  func.func @transform_6(%arg0: i32) -> (i32, i32) {
    %c0_i32 = arith.constant 0 : i32
    %c0_i32_0 = arith.constant 0 : i32
    %c0_i32_1 = arith.constant 0 : i32
    return %c0_i32, %c0_i32_0 : i32, i32
  }
  func.func @transform_7(%arg0: i32) -> (i32, i32) {
    %c0_i32 = arith.constant 0 : i32
    %c0_i32_0 = arith.constant 0 : i32
    %c0_i32_1 = arith.constant 0 : i32
    return %c0_i32, %c0_i32_0 : i32, i32
  }
  func.func @transform_8(%arg0: i32) -> (i32, i32) {
    %c0_i32 = arith.constant 0 : i32
    %c0_i32_0 = arith.constant 0 : i32
    %c0_i32_1 = arith.constant 0 : i32
    return %c0_i32, %c0_i32_0 : i32, i32
  }
  func.func @transform_9(%arg0: i32) -> (i32, i32) {
    %c0_i32 = arith.constant 0 : i32
    %c0_i32_0 = arith.constant 0 : i32
    %c0_i32_1 = arith.constant 0 : i32
    return %c0_i32, %c0_i32_0 : i32, i32
  }
  func.func @transform_10(%arg0: i32) -> (i32, i32) {
    %c0_i32 = arith.constant 0 : i32
    %c0_i32_0 = arith.constant 0 : i32
    %c0_i32_1 = arith.constant 0 : i32
    return %c0_i32, %c0_i32_0 : i32, i32
  }
  func.func @transform_11(%arg0: i32) -> (i32, i32) {
    %c0_i32 = arith.constant 0 : i32
    %c0_i32_0 = arith.constant 0 : i32
    %c0_i32_1 = arith.constant 0 : i32
    return %c0_i32, %c0_i32_0 : i32, i32
  }
  func.func @transform_12(%arg0: i32) -> (i32, i32, i32) {
    %c0_i32 = arith.constant 0 : i32
    %c0_i32_0 = arith.constant 0 : i32
    %c0_i32_1 = arith.constant 0 : i32
    return %arg0, %c0_i32, %c0_i32_0 : i32, i32, i32
  }
}

</mosaic_0001>

<llo_original>
// kernel: tpu_custom_call.1
$region0: #{tpu_custom_call.1}
  #allocation0 [shape = 'u32[]', space=smem, size = 0x4, offset = 0x4, fixed_abs, tag = 'smem constant byte address 0x4 - core index']
  #allocation1 [shape = 'u32[144,128]{1,0:T(1,128)}', space=vmem, size = 0x12000, scoped, tag = 'internal scratch']
  #allocation2 [shape = 'f32[1,1]{1,0:T(1,128)S(6)}', space=smem, size = 0x200, scoped, tag = 'scoped memory for tpu_custom_call.1']
  %s0 = inlined_call_operand.hbm [shape: f32[2,16,128], index: 0, kind: input, shape index: {}]
  %s1 = inlined_call_operand.vmem [shape: s32[2,1,16], index: 1, kind: input, shape index: {}]
  %s2 = inlined_call_operand.hbm [shape: f32[384,128], index: 2, kind: input, shape index: {}]
  %s3 = inlined_call_operand.vmem [shape: f32[1,128], index: 3, kind: input, shape index: {}]
  %s4 = inlined_call_operand.vmem [shape: f32[1,128], index: 4, kind: input, shape index: {}]
  %s5 = inlined_call_operand.vmem [shape: f32[1,128], index: 5, kind: input, shape index: {}]
  %s6 = inlined_call_operand.hbm [shape: f32[384,128], index: 6, kind: input, shape index: {}]
  %s7 = inlined_call_operand.vmem [shape: f32[1,128], index: 7, kind: input, shape index: {}]
  %s8 = inlined_call_operand.vmem [shape: f32[1,128], index: 8, kind: input, shape index: {}]
  %s9 = inlined_call_operand.vmem [shape: f32[1,128], index: 9, kind: input, shape index: {}]
  %s10 = inlined_call_operand.vmem [shape: f32[1,128], index: 10, kind: input, shape index: {}]
  %s11 = inlined_call_operand.<no memory space> [shape: f32[1,1], index: 11, kind: input, shape index: {}]
  %s12 = inlined_call_operand.hbm [shape: f32[2,1,16], index: 12, kind: output, shape index: {}]
  %s13 = sld [smem:[#allocation0]]
  $region93: #{tpu_custom_call.1} parent=0
    _
  %s15 = ssub.s32 1, %s13
  %s16 = scalar_select 0, %s15, %s13
  %17 = sst [smem:[#allocation2]] %s11
  $region1: #{tpu_custom_call.1} parent=0
    #allocation3 [shape = 'u8[16384]{0}', space=vmem, size = 0x4000, scoped, tag = 'input window, operand 0']
    #allocation4 [shape = 's32[2]{0}', space=sflag, size = 0x8, scoped, tag = 'scoped memory for tpu_custom_call.1']
    #allocation5 [shape = 's32[2]{0}', space=sflag, size = 0x8, scoped, tag = 'scoped memory for tpu_custom_call.1']
    #allocation6 [shape = 'u8[196608]{0}', space=vmem, size = 0x30000, scoped, tag = 'input window, operand 2, single buffered']
    #allocation7 [shape = 's32[1]{0}', space=sflag, size = 0x4, scoped, tag = 'scoped memory for tpu_custom_call.1']
    #allocation8 [shape = 'u8[196608]{0}', space=vmem, size = 0x30000, scoped, tag = 'input window, operand 6, single buffered']
    #allocation9 [shape = 'u8[1024]{0}', space=vmem, size = 0x400, scoped, tag = 'output window, operand 0']
    %18 = vsyncpa [#allocation4], 0
    %s19 = scalar_lea.sflag [#allocation4], 1
    %20 = vsyncpa %s19, 0
    %21 = vsyncpa [#allocation7], 0
    %22 = vsyncpa [#allocation5], 0
    %s23 = scalar_lea.sflag [#allocation5], 1
    %24 = vsyncpa %s23, 0
    loop: start=0, step=1, limit=4
    $region2: #{tpu_custom_call.1} parent=1 // loop_pre_header
      _
    $region3: #{tpu_custom_call.1} parent=1 // loop_header
      %s26 = sphi 0, %s30
      %p27 = scmp.ge.s32.totalorder %s26, 4
      %s36 = sphi 0, %s38
      %s39 = sphi 0, %s36
      %s40 = sphi 0, %s39
      %s56 = sphi 0, %s40
      %s62 = sphi 0, %s64
      %s65 = sphi 0, %s62
      %s66 = sphi 0, %s65
      %s82 = sphi 0, %s66
      %s86 = sphi 0, %s86
      %s88 = sphi 0, %s86
      %s89 = sphi 0, %s88
      %s103 = sphi 0, %s89
      %s107 = sphi 0, %s107
      %s109 = sphi 0, %s107
      %s110 = sphi 0, %s109
      %s124 = sphi 0, %s110
      %s128 = sphi 0, %s128
      %s130 = sphi 0, %s128
      %s131 = sphi 0, %s130
      %s145 = sphi 0, %s131
      %s149 = sphi 0, %s149
      %s151 = sphi 0, %s149
      %s152 = sphi 0, %s151
      %s166 = sphi 0, %s152
      %s170 = sphi 0, %s170
      %s172 = sphi 0, %s170
      %s173 = sphi 0, %s172
      %s187 = sphi 0, %s173
      %s191 = sphi 0, %s191
      %s193 = sphi 0, %s191
      %s194 = sphi 0, %s193
      %s208 = sphi 0, %s194
      %s212 = sphi 0, %s212
      %s214 = sphi 0, %s212
      %s215 = sphi 0, %s214
      %s229 = sphi 0, %s215
      %s233 = sphi 0, %s233
      %s235 = sphi 0, %s233
      %s236 = sphi 0, %s235
      %s250 = sphi 0, %s236
      %s254 = sphi 0, %s254
      %s256 = sphi 0, %s254
      %s257 = sphi 0, %s256
      %s271 = sphi 0, %s257
      %s275 = sphi 0, %s275
      %s277 = sphi 0, %s275
      %s278 = sphi 0, %s277
      %s292 = sphi 0, %s278
      %s298 = sphi 0, %s300
      %s301 = sphi 0, %s298
      %s302 = sphi 0, %s301
      %s318 = sphi 0, %s302
    $region4: #{tpu_custom_call.1} parent=1 // loop_header_branch
      %29 = sbr.rel (%p27) target = $region8
    $region5: #{tpu_custom_call.1} parent=1 // loop_body
      %s31 = ssub.s32 %s26, 1
      %s32 = ssub.s32 %s26, 2
      %s33 = sadd.s32 %s26, 1
      %s34 = ssub.s32 %s26, %s33
      %p35 = scmp.eq.s32.totalorder %s34, 0
      %s37 = sadd.s32 %s36, 1
      %s38 = scalar_select %p35, %s36, %s37
      %p41 = pneg %p35
      %p42 = scmp.eq.s32.totalorder %s26, 1
      %p43 = por %p41, %p42
      %p44 = scmp.ne.s32.totalorder %s36, %s39
      %p45 = scmp.eq.s32.totalorder %s26, 0
      %p46 = por %p44, %p45
      %p47 = scmp.ne.s32.totalorder %s36, %s39
      %p48 = scmp.eq.s32.totalorder %s31, 1
      %p49 = por %p47, %p48
      %p50 = scmp.ne.s32.totalorder %s39, %s40
      %p51 = scmp.eq.s32.totalorder %s31, 0
      %p52 = por %p50, %p51
      %p53 = scmp.ne.s32.totalorder %s39, %s40
      %p54 = scmp.eq.s32.totalorder %s32, 1
      %p55 = por %p53, %p54
      %p57 = scmp.ne.s32.totalorder %s40, %s56
      %p58 = scmp.eq.s32.totalorder %s32, 0
      %p59 = por %p57, %p58
      %s60 = ssub.s32 %s26, %s33
      %p61 = scmp.eq.s32.totalorder %s60, 0
      %s63 = sadd.s32 %s62, 1
      %s64 = scalar_select %p61, %s62, %s63
      %p67 = pneg %p61
      %p68 = scmp.eq.s32.totalorder %s26, 1
      %p69 = por %p67, %p68
      %p70 = scmp.ne.s32.totalorder %s62, %s65
      %p71 = scmp.eq.s32.totalorder %s26, 0
      %p72 = por %p70, %p71
      %p73 = scmp.ne.s32.totalorder %s62, %s65
      %p74 = scmp.eq.s32.totalorder %s31, 1
      %p75 = por %p73, %p74
      %p76 = scmp.ne.s32.totalorder %s65, %s66
      %p77 = scmp.eq.s32.totalorder %s31, 0
      %p78 = por %p76, %p77
      %p79 = scmp.ne.s32.totalorder %s65, %s66
      %p80 = scmp.eq.s32.totalorder %s32, 1
      %p81 = por %p79, %p80
      %p83 = scmp.ne.s32.totalorder %s66, %s82
      %p84 = scmp.eq.s32.totalorder %s32, 0
      %p85 = por %p83, %p84
      %s87 = sadd.s32 %s86, 1
      %p90 = scmp.eq.s32.totalorder %s26, 1
      %p91 = scmp.ne.s32.totalorder %s86, %s88
      %p92 = scmp.eq.s32.totalorder %s26, 0
      %p93 = por %p91, %p92
      %p94 = scmp.ne.s32.totalorder %s86, %s88
      %p95 = scmp.eq.s32.totalorder %s31, 1
      %p96 = por %p94, %p95
      %p97 = scmp.ne.s32.totalorder %s88, %s89
      %p98 = scmp.eq.s32.totalorder %s31, 0
      %p99 = por %p97, %p98
      %p100 = scmp.ne.s32.totalorder %s88, %s89
      %p101 = scmp.eq.s32.totalorder %s32, 1
      %p102 = por %p100, %p101
      %p104 = scmp.ne.s32.totalorder %s89, %s103
      %p105 = scmp.eq.s32.totalorder %s32, 0
      %p106 = por %p104, %p105
      %s108 = sadd.s32 %s107, 1
      %p111 = scmp.eq.s32.totalorder %s26, 1
      %p112 = scmp.ne.s32.totalorder %s107, %s109
      %p113 = scmp.eq.s32.totalorder %s26, 0
      %p114 = por %p112, %p113
      %p115 = scmp.ne.s32.totalorder %s107, %s109
      %p116 = scmp.eq.s32.totalorder %s31, 1
      %p117 = por %p115, %p116
      %p118 = scmp.ne.s32.totalorder %s109, %s110
      %p119 = scmp.eq.s32.totalorder %s31, 0
      %p120 = por %p118, %p119
      %p121 = scmp.ne.s32.totalorder %s109, %s110
      %p122 = scmp.eq.s32.totalorder %s32, 1
      %p123 = por %p121, %p122
      %p125 = scmp.ne.s32.totalorder %s110, %s124
      %p126 = scmp.eq.s32.totalorder %s32, 0
      %p127 = por %p125, %p126
      %s129 = sadd.s32 %s128, 1
      %p132 = scmp.eq.s32.totalorder %s26, 1
      %p133 = scmp.ne.s32.totalorder %s128, %s130
      %p134 = scmp.eq.s32.totalorder %s26, 0
      %p135 = por %p133, %p134
      %p136 = scmp.ne.s32.totalorder %s128, %s130
      %p137 = scmp.eq.s32.totalorder %s31, 1
      %p138 = por %p136, %p137
      %p139 = scmp.ne.s32.totalorder %s130, %s131
      %p140 = scmp.eq.s32.totalorder %s31, 0
      %p141 = por %p139, %p140
      %p142 = scmp.ne.s32.totalorder %s130, %s131
      %p143 = scmp.eq.s32.totalorder %s32, 1
      %p144 = por %p142, %p143
      %p146 = scmp.ne.s32.totalorder %s131, %s145
      %p147 = scmp.eq.s32.totalorder %s32, 0
      %p148 = por %p146, %p147
      %s150 = sadd.s32 %s149, 1
      %p153 = scmp.eq.s32.totalorder %s26, 1
      %p154 = scmp.ne.s32.totalorder %s149, %s151
      %p155 = scmp.eq.s32.totalorder %s26, 0
      %p156 = por %p154, %p155
      %p157 = scmp.ne.s32.totalorder %s149, %s151
      %p158 = scmp.eq.s32.totalorder %s31, 1
      %p159 = por %p157, %p158
      %p160 = scmp.ne.s32.totalorder %s151, %s152
      %p161 = scmp.eq.s32.totalorder %s31, 0
      %p162 = por %p160, %p161
      %p163 = scmp.ne.s32.totalorder %s151, %s152
      %p164 = scmp.eq.s32.totalorder %s32, 1
      %p165 = por %p163, %p164
      %p167 = scmp.ne.s32.totalorder %s152, %s166
      %p168 = scmp.eq.s32.totalorder %s32, 0
      %p169 = por %p167, %p168
      %s171 = sadd.s32 %s170, 1
      %p174 = scmp.eq.s32.totalorder %s26, 1
      %p175 = scmp.ne.s32.totalorder %s170, %s172
      %p176 = scmp.eq.s32.totalorder %s26, 0
      %p177 = por %p175, %p176
      %p178 = scmp.ne.s32.totalorder %s170, %s172
      %p179 = scmp.eq.s32.totalorder %s31, 1
      %p180 = por %p178, %p179
      %p181 = scmp.ne.s32.totalorder %s172, %s173
      %p182 = scmp.eq.s32.totalorder %s31, 0
      %p183 = por %p181, %p182
      %p184 = scmp.ne.s32.totalorder %s172, %s173
      %p185 = scmp.eq.s32.totalorder %s32, 1
      %p186 = por %p184, %p185
      %p188 = scmp.ne.s32.totalorder %s173, %s187
      %p189 = scmp.eq.s32.totalorder %s32, 0
      %p190 = por %p188, %p189
      %s192 = sadd.s32 %s191, 1
      %p195 = scmp.eq.s32.totalorder %s26, 1
      %p196 = scmp.ne.s32.totalorder %s191, %s193
      %p197 = scmp.eq.s32.totalorder %s26, 0
      %p198 = por %p196, %p197
      %p199 = scmp.ne.s32.totalorder %s191, %s193
      %p200 = scmp.eq.s32.totalorder %s31, 1
      %p201 = por %p199, %p200
      %p202 = scmp.ne.s32.totalorder %s193, %s194
      %p203 = scmp.eq.s32.totalorder %s31, 0
      %p204 = por %p202, %p203
      %p205 = scmp.ne.s32.totalorder %s193, %s194
      %p206 = scmp.eq.s32.totalorder %s32, 1
      %p207 = por %p205, %p206
      %p209 = scmp.ne.s32.totalorder %s194, %s208
      %p210 = scmp.eq.s32.totalorder %s32, 0
      %p211 = por %p209, %p210
      %s213 = sadd.s32 %s212, 1
      %p216 = scmp.eq.s32.totalorder %s26, 1
      %p217 = scmp.ne.s32.totalorder %s212, %s214
      %p218 = scmp.eq.s32.totalorder %s26, 0
      %p219 = por %p217, %p218
      %p220 = scmp.ne.s32.totalorder %s212, %s214
      %p221 = scmp.eq.s32.totalorder %s31, 1
      %p222 = por %p220, %p221
      %p223 = scmp.ne.s32.totalorder %s214, %s215
      %p224 = scmp.eq.s32.totalorder %s31, 0
      %p225 = por %p223, %p224
      %p226 = scmp.ne.s32.totalorder %s214, %s215
      %p227 = scmp.eq.s32.totalorder %s32, 1
      %p228 = por %p226, %p227
      %p230 = scmp.ne.s32.totalorder %s215, %s229
      %p231 = scmp.eq.s32.totalorder %s32, 0
      %p232 = por %p230, %p231
      %s234 = sadd.s32 %s233, 1
      %p237 = scmp.eq.s32.totalorder %s26, 1
      %p238 = scmp.ne.s32.totalorder %s233, %s235
      %p239 = scmp.eq.s32.totalorder %s26, 0
      %p240 = por %p238, %p239
      %p241 = scmp.ne.s32.totalorder %s233, %s235
      %p242 = scmp.eq.s32.totalorder %s31, 1
      %p243 = por %p241, %p242
      %p244 = scmp.ne.s32.totalorder %s235, %s236
      %p245 = scmp.eq.s32.totalorder %s31, 0
      %p246 = por %p244, %p245
      %p247 = scmp.ne.s32.totalorder %s235, %s236
      %p248 = scmp.eq.s32.totalorder %s32, 1
      %p249 = por %p247, %p248
      %p251 = scmp.ne.s32.totalorder %s236, %s250
      %p252 = scmp.eq.s32.totalorder %s32, 0
      %p253 = por %p251, %p252
      %s255 = sadd.s32 %s254, 1
      %p258 = scmp.eq.s32.totalorder %s26, 1
      %p259 = scmp.ne.s32.totalorder %s254, %s256
      %p260 = scmp.eq.s32.totalorder %s26, 0
      %p261 = por %p259, %p260
      %p262 = scmp.ne.s32.totalorder %s254, %s256
      %p263 = scmp.eq.s32.totalorder %s31, 1
      %p264 = por %p262, %p263
      %p265 = scmp.ne.s32.totalorder %s256, %s257
      %p266 = scmp.eq.s32.totalorder %s31, 0
      %p267 = por %p265, %p266
      %p268 = scmp.ne.s32.totalorder %s256, %s257
      %p269 = scmp.eq.s32.totalorder %s32, 1
      %p270 = por %p268, %p269
      %p272 = scmp.ne.s32.totalorder %s257, %s271
      %p273 = scmp.eq.s32.totalorder %s32, 0
      %p274 = por %p272, %p273
      %s276 = sadd.s32 %s275, 1
      %p279 = scmp.eq.s32.totalorder %s26, 1
      %p280 = scmp.ne.s32.totalorder %s275, %s277
      %p281 = scmp.eq.s32.totalorder %s26, 0
      %p282 = por %p280, %p281
      %p283 = scmp.ne.s32.totalorder %s275, %s277
      %p284 = scmp.eq.s32.totalorder %s31, 1
      %p285 = por %p283, %p284
      %p286 = scmp.ne.s32.totalorder %s277, %s278
      %p287 = scmp.eq.s32.totalorder %s31, 0
      %p288 = por %p286, %p287
      %p289 = scmp.ne.s32.totalorder %s277, %s278
      %p290 = scmp.eq.s32.totalorder %s32, 1
      %p291 = por %p289, %p290
      %p293 = scmp.ne.s32.totalorder %s278, %s292
      %p294 = scmp.eq.s32.totalorder %s32, 0
      %p295 = por %p293, %p294
      %s296 = ssub.s32 %s26, %s33
      %p297 = scmp.eq.s32.totalorder %s296, 0
      %s299 = sadd.s32 %s298, 1
      %s300 = scalar_select %p297, %s298, %s299
      %p303 = pneg %p297
      %p304 = scmp.eq.s32.totalorder %s26, 1
      %p305 = por %p303, %p304
      %p306 = scmp.ne.s32.totalorder %s298, %s301
      %p307 = scmp.eq.s32.totalorder %s26, 0
      %p308 = por %p306, %p307
      %p309 = scmp.ne.s32.totalorder %s298, %s301
      %p310 = scmp.eq.s32.totalorder %s31, 1
      %p311 = por %p309, %p310
      %p312 = scmp.ne.s32.totalorder %s301, %s302
      %p313 = scmp.eq.s32.totalorder %s31, 0
      %p314 = por %p312, %p313
      %p315 = scmp.ne.s32.totalorder %s301, %s302
      %p316 = scmp.eq.s32.totalorder %s32, 1
      %p317 = por %p315, %p316
      %p319 = scmp.ne.s32.totalorder %s302, %s318
      %p320 = scmp.eq.s32.totalorder %s32, 0
      %p321 = por %p319, %p320
      %p322 = scmp.le.s32.totalorder 1, %s26
      %p323 = scmp.lt.s32.totalorder %s26, 3
      %p324 = pnand %p322, %p323
      %p325 = pneg %p324
      // Predicated region
      $region9: #{tpu_custom_call.1} parent=5 // pred_check
        _
      $region10: #{tpu_custom_call.1} parent=5 // pred_check_branch
        %327 = sbr.rel (%p324) target = $region12
      $region11: #{tpu_custom_call.1} parent=5 // pred_region
        %s328 = ssub.s32 %s26, 1
        // Predicated region
        $region13: #{tpu_custom_call.1} parent=11 // pred_check
          %p329 = pneg %p99
        $region14: #{tpu_custom_call.1} parent=11 // pred_check_branch
          %331 = sbr.rel (%p329) target = $region16
        $region15: #{tpu_custom_call.1} parent=11 // pred_region
          %s333 = ssub.s32 6144, 6144
          %334 = vsyncadd [#allocation7], %s333
          %s335 = sshll.u32 [#allocation6], 4
          %s336 = int_to_ptr.vmem [resolvable:$true] %s335
          %341 = dma.hbm_to_vmem [thread:$0]  %s2, 6144, %s336, [#allocation7], 128, 128, 8
        $region16: #{tpu_custom_call.1} parent=11 // pred_fallthru
          _
        // Predicated region
        $region17: #{tpu_custom_call.1} parent=11 // pred_check
          %p342 = pneg %p120
        $region18: #{tpu_custom_call.1} parent=11 // pred_check_branch
          %344 = sbr.rel (%p342) target = $region20
        $region19: #{tpu_custom_call.1} parent=11 // pred_region
          _
        $region20: #{tpu_custom_call.1} parent=11 // pred_fallthru
          _
        // Predicated region
        $region21: #{tpu_custom_call.1} parent=11 // pred_check
          %p345 = pneg %p141
        $region22: #{tpu_custom_call.1} parent=11 // pred_check_branch
          %347 = sbr.rel (%p345) target = $region24
        $region23: #{tpu_custom_call.1} parent=11 // pred_region
          _
        $region24: #{tpu_custom_call.1} parent=11 // pred_fallthru
          _
        // Predicated region
        $region25: #{tpu_custom_call.1} parent=11 // pred_check
          %p348 = pneg %p162
        $region26: #{tpu_custom_call.1} parent=11 // pred_check_branch
          %350 = sbr.rel (%p348) target = $region28
        $region27: #{tpu_custom_call.1} parent=11 // pred_region
          _
        $region28: #{tpu_custom_call.1} parent=11 // pred_fallthru
          _
        // Predicated region
        $region29: #{tpu_custom_call.1} parent=11 // pred_check
          %p351 = pneg %p183
        $region30: #{tpu_custom_call.1} parent=11 // pred_check_branch
          %353 = sbr.rel (%p351) target = $region32
        $region31: #{tpu_custom_call.1} parent=11 // pred_region
          %s355 = ssub.s32 6144, 6144
          %356 = vsyncadd [#allocation7], %s355
          %s357 = sshll.u32 [#allocation8], 4
          %s358 = int_to_ptr.vmem [resolvable:$true] %s357
          %363 = dma.hbm_to_vmem [thread:$0]  %s6, 6144, %s358, [#allocation7], 128, 128, 8
        $region32: #{tpu_custom_call.1} parent=11 // pred_fallthru
          _
        // Predicated region
        $region33: #{tpu_custom_call.1} parent=11 // pred_check
          %p364 = pneg %p204
        $region34: #{tpu_custom_call.1} parent=11 // pred_check_branch
          %366 = sbr.rel (%p364) target = $region36
        $region35: #{tpu_custom_call.1} parent=11 // pred_region
          _
        $region36: #{tpu_custom_call.1} parent=11 // pred_fallthru
          _
        // Predicated region
        $region37: #{tpu_custom_call.1} parent=11 // pred_check
          %p367 = pneg %p225
        $region38: #{tpu_custom_call.1} parent=11 // pred_check_branch
          %369 = sbr.rel (%p367) target = $region40
        $region39: #{tpu_custom_call.1} parent=11 // pred_region
          _
        $region40: #{tpu_custom_call.1} parent=11 // pred_fallthru
          _
        // Predicated region
        $region41: #{tpu_custom_call.1} parent=11 // pred_check
          %p370 = pneg %p246
        $region42: #{tpu_custom_call.1} parent=11 // pred_check_branch
          %372 = sbr.rel (%p370) target = $region44
        $region43: #{tpu_custom_call.1} parent=11 // pred_region
          _
        $region44: #{tpu_custom_call.1} parent=11 // pred_fallthru
          _
        // Predicated region
        $region45: #{tpu_custom_call.1} parent=11 // pred_check
          %p373 = pneg %p267
        $region46: #{tpu_custom_call.1} parent=11 // pred_check_branch
          %375 = sbr.rel (%p373) target = $region48
        $region47: #{tpu_custom_call.1} parent=11 // pred_region
          _
        $region48: #{tpu_custom_call.1} parent=11 // pred_fallthru
          _
        // Predicated region
        $region49: #{tpu_custom_call.1} parent=11 // pred_check
          %p376 = pneg %p288
        $region50: #{tpu_custom_call.1} parent=11 // pred_check_branch
          %378 = sbr.rel (%p376) target = $region52
        $region51: #{tpu_custom_call.1} parent=11 // pred_region
          _
        $region52: #{tpu_custom_call.1} parent=11 // pred_fallthru
          _
      $region12: #{tpu_custom_call.1} parent=5 // pred_fallthru
        _
      %p379 = scmp.lt.s32.totalorder %s26, 2
      // Predicated region
      $region53: #{tpu_custom_call.1} parent=5 // pred_check
        %p380 = pneg %p379
      $region54: #{tpu_custom_call.1} parent=5 // pred_check_branch
        %382 = sbr.rel (%p380) target = $region56
      $region55: #{tpu_custom_call.1} parent=5 // pred_region
        // Predicated region
        $region57: #{tpu_custom_call.1} parent=55 // pred_check
          %p383 = pneg %p46
        $region58: #{tpu_custom_call.1} parent=55 // pred_check_branch
          %385 = sbr.rel (%p383) target = $region60
        $region59: #{tpu_custom_call.1} parent=55 // pred_region
          %s386 = sand.u32 %s36, 1
          %s387 = scalar_lea.sflag [#allocation4], %s386
          %s388 = sand.u32 %s36, 1
          %s389 = smul.addr %s388, 16
          %s390 = scalar_lea.vmem [#allocation3], %s389
          %s392 = ssub.s32 256, 256
          %393 = vsyncadd %s387, %s392
          %s394 = smul.addr %s26, 2
          %s395 = smul.addr %s394, 128
          %s396 = scalar_lea.hbm %s0, %s395
          %s397 = sshll.u32 %s390, 4
          %s398 = int_to_ptr.vmem [resolvable:$true] %s397
          %403 = dma.hbm_to_vmem [thread:$0]  %s396, 256, %s398, %s387, 128, 128, 8
        $region60: #{tpu_custom_call.1} parent=55 // pred_fallthru
          _
        // Predicated region
        $region61: #{tpu_custom_call.1} parent=55 // pred_check
          %p404 = pneg %p72
        $region62: #{tpu_custom_call.1} parent=55 // pred_check_branch
          %406 = sbr.rel (%p404) target = $region64
        $region63: #{tpu_custom_call.1} parent=55 // pred_region
          %p407 = scmp.lt.s32.totalorder %s26, 1
          %s408 = scalar_select %p407, %s26, 1
          %s409 = scalar_lea.vmem %s1, %s408
        $region64: #{tpu_custom_call.1} parent=55 // pred_fallthru
          _
      $region56: #{tpu_custom_call.1} parent=5 // pred_fallthru
        _
      %p410 = scmp.le.s32.totalorder 1, %s26
      %p411 = scmp.lt.s32.totalorder %s26, 3
      %p412 = pnand %p410, %p411
      %p413 = pneg %p412
      // Predicated region
      $region65: #{tpu_custom_call.1} parent=5 // pred_check
        _
      $region66: #{tpu_custom_call.1} parent=5 // pred_check_branch
        %415 = sbr.rel (%p412) target = $region68
      $region67: #{tpu_custom_call.1} parent=5 // pred_region
        %s416 = ssub.s32 %s26, 1
        %s417 = sand.u32 %s39, 1
        %s418 = scalar_lea.sflag [#allocation4], %s417
        %s419 = sand.u32 %s39, 1
        %s420 = smul.addr %s419, 16
        %s421 = scalar_lea.vmem [#allocation3], %s420
        // Predicated region
        $region69: #{tpu_custom_call.1} parent=67 // pred_check
          %p422 = pneg %p52
        $region70: #{tpu_custom_call.1} parent=67 // pred_check_branch
          %424 = sbr.rel (%p422) target = $region72
        $region71: #{tpu_custom_call.1} parent=67 // pred_region
          %425 = dma.done %s418, 256
        $region72: #{tpu_custom_call.1} parent=67 // pred_fallthru
          _
        // Predicated region
        $region73: #{tpu_custom_call.1} parent=67 // pred_check
          %p426 = pneg %p99
        $region74: #{tpu_custom_call.1} parent=67 // pred_check_branch
          %428 = sbr.rel (%p426) target = $region76
        $region75: #{tpu_custom_call.1} parent=67 // pred_region
          %429 = dma.done [#allocation7], 6144
        $region76: #{tpu_custom_call.1} parent=67 // pred_fallthru
          _
        // Predicated region
        $region77: #{tpu_custom_call.1} parent=67 // pred_check
          %p430 = pneg %p183
        $region78: #{tpu_custom_call.1} parent=67 // pred_check_branch
          %432 = sbr.rel (%p430) target = $region80
        $region79: #{tpu_custom_call.1} parent=67 // pred_region
          %433 = dma.done [#allocation7], 6144
        $region80: #{tpu_custom_call.1} parent=67 // pred_fallthru
          _
        %s434 = sand.u32 %s39, 1
        %s435 = scalar_lea.sflag [#allocation4], %s434
        %s436 = sand.u32 %s39, 1
        %s437 = smul.addr %s436, 16
        %s438 = scalar_lea.vmem [#allocation3], %s437
        %p439 = pneg %p52
        %p440 = pneg %p49
        %p441 = scmp.lt.s32.totalorder %s31, 1
        %s442 = scalar_select %p441, %s31, 1
        %s443 = scalar_lea.vmem %s1, %s442
        %p444 = pneg %p78
        %p445 = pneg %p75
        %p446 = pneg %p99
        %p447 = pneg %p96
        %p448 = pneg %p120
        %p449 = pneg %p117
        %p450 = pneg %p141
        %p451 = pneg %p138
        %p452 = pneg %p162
        %p453 = pneg %p159
        %p454 = pneg %p183
        %p455 = pneg %p180
        %p456 = pneg %p204
        %p457 = pneg %p201
        %p458 = pneg %p225
        %p459 = pneg %p222
        %p460 = pneg %p246
        %p461 = pneg %p243
        %p462 = pneg %p267
        %p463 = pneg %p264
        %p464 = pneg %p288
        %p465 = pneg %p285
        %p466 = pneg %p314
        %p467 = pneg %p311
        %s468 = sand.u32 %s301, 1
        %s469 = scalar_lea.sflag [#allocation5], %s468
        %s470 = sand.u32 %s301, 1
        %s471 = scalar_lea.vmem [#allocation9], %s470
        %p472 = scmp.lt.s32.totalorder %s31, 1
        %s473 = scalar_select %p472, %s31, 1
        %s474 = scalar_lea.vmem %s1, %s473
        %v475 = vld [vmem:[%s421] sm:$0xff]
        %v476 = vld [vmem:[%s421 + $0x8] sm:$0xff]
        %vm479 = vcmask 1040384
        %v480 = vrot.slane %v475, 7
        %v481 = vrot.slane %v476, 7
        %v482 = vsel %vm479, %v480, %v481
        %v485 = vsel %vm479, 0.0, %v480
        %vm486 = vcmask 1046528
        %v487 = vrot.slane %v475, 1
        %v488 = vrot.slane %v476, 1
        %v489 = vsel %vm486, %v487, %v488
        %v492 = vsel %vm486, %v488, 0.0
        %v493 = vld [vmem:[#allocation6] sm:$0xff]
        %v494 = vld [vmem:[#allocation6 + $0x8] sm:$0xff]
        %v495 = vld [vmem:[#allocation6 + $0x10] sm:$0xff]
        %v496 = vld [vmem:[#allocation6 + $0x18] sm:$0xff]
        %v497 = vld [vmem:[#allocation6 + $0x20] sm:$0xff]
        %v498 = vld [vmem:[#allocation6 + $0x28] sm:$0xff]
        %v499 = vld [vmem:[#allocation6 + $0x30] sm:$0xff]
        %v500 = vld [vmem:[#allocation6 + $0x38] sm:$0xff]
        %v501 = vld [vmem:[#allocation6 + $0x40] sm:$0xff]
        %v502 = vld [vmem:[#allocation6 + $0x48] sm:$0xff]
        %v503 = vld [vmem:[#allocation6 + $0x50] sm:$0xff]
        %v504 = vld [vmem:[#allocation6 + $0x58] sm:$0xff]
        %v505 = vld [vmem:[#allocation6 + $0x60] sm:$0xff]
        %v506 = vld [vmem:[#allocation6 + $0x68] sm:$0xff]
        %v507 = vld [vmem:[#allocation6 + $0x70] sm:$0xff]
        %v508 = vld [vmem:[#allocation6 + $0x78] sm:$0xff]
        %v509 = vld [vmem:[#allocation6 + $0x80] sm:$0xff]
        %v510 = vld [vmem:[#allocation6 + $0x88] sm:$0xff]
        %v511 = vld [vmem:[#allocation6 + $0x90] sm:$0xff]
        %v512 = vld [vmem:[#allocation6 + $0x98] sm:$0xff]
        %v513 = vld [vmem:[#allocation6 + $0xa0] sm:$0xff]
        %v514 = vld [vmem:[#allocation6 + $0xa8] sm:$0xff]
        %v515 = vld [vmem:[#allocation6 + $0xb0] sm:$0xff]
        %v516 = vld [vmem:[#allocation6 + $0xb8] sm:$0xff]
        %v517 = vld [vmem:[#allocation6 + $0xc0] sm:$0xff]
        %v518 = vld [vmem:[#allocation6 + $0xc8] sm:$0xff]
        %v519 = vld [vmem:[#allocation6 + $0xd0] sm:$0xff]
        %v520 = vld [vmem:[#allocation6 + $0xd8] sm:$0xff]
        %v521 = vld [vmem:[#allocation6 + $0xe0] sm:$0xff]
        %v522 = vld [vmem:[#allocation6 + $0xe8] sm:$0xff]
        %v523 = vld [vmem:[#allocation6 + $0xf0] sm:$0xff]
        %v524 = vld [vmem:[#allocation6 + $0xf8] sm:$0xff]
        %v525 = vld [vmem:[#allocation6 + $0x100] sm:$0xff]
        %v526 = vld [vmem:[#allocation6 + $0x108] sm:$0xff]
        %v527 = vld [vmem:[#allocation6 + $0x110] sm:$0xff]
        %v528 = vld [vmem:[#allocation6 + $0x118] sm:$0xff]
        %v529 = vld [vmem:[#allocation6 + $0x120] sm:$0xff]
        %v530 = vld [vmem:[#allocation6 + $0x128] sm:$0xff]
        %v531 = vld [vmem:[#allocation6 + $0x130] sm:$0xff]
        %v532 = vld [vmem:[#allocation6 + $0x138] sm:$0xff]
        %v533 = vld [vmem:[#allocation6 + $0x140] sm:$0xff]
        %v534 = vld [vmem:[#allocation6 + $0x148] sm:$0xff]
        %v535 = vld [vmem:[#allocation6 + $0x150] sm:$0xff]
        %v536 = vld [vmem:[#allocation6 + $0x158] sm:$0xff]
        %v537 = vld [vmem:[#allocation6 + $0x160] sm:$0xff]
        %v538 = vld [vmem:[#allocation6 + $0x168] sm:$0xff]
        %v539 = vld [vmem:[#allocation6 + $0x170] sm:$0xff]
        %v540 = vld [vmem:[#allocation6 + $0x178] sm:$0xff]
        %v541 = vld [vmem:[%s3] sm:$0x1]
        %v543 = vlaneseq
        %v544 = vshrl.u32 %v543, 7
        %v545 = vsub.s32 0, %v544
        %v546 = vrot.slane %v541, %v545
        %548 = vmatprep.subr.mxu0 0.0
        %549 = vmatpush1.msra.mxu0 %v508
        %550 = vmatprep.subr.mxu0 0.0
        %551 = vmatpush1.msra.mxu0 %v507
        %552 = vmatprep.subr.mxu0 0.0
        %553 = vmatpush1.msra.mxu0 %v506
        %554 = vmatprep.subr.mxu0 0.0
        %555 = vmatpush1.msra.mxu0 %v505
        %556 = vmatprep.subr.mxu0 0.0
        %557 = vmatpush1.msra.mxu0 %v504
        %558 = vmatprep.subr.mxu0 0.0
        %559 = vmatpush1.msra.mxu0 %v503
        %560 = vmatprep.subr.mxu0 0.0
        %561 = vmatpush1.msra.mxu0 %v502
        %562 = vmatprep.subr.mxu0 0.0
        %563 = vmatpush1.msra.mxu0 %v501
        %564 = vmatprep.subr.mxu0 0.0
        %565 = vmatpush1.msra.mxu0 %v500
        %566 = vmatprep.subr.mxu0 0.0
        %567 = vmatpush1.msra.mxu0 %v499
        %568 = vmatprep.subr.mxu0 0.0
        %569 = vmatpush1.msra.mxu0 %v498
        %570 = vmatprep.subr.mxu0 0.0
        %571 = vmatpush1.msra.mxu0 %v497
        %572 = vmatprep.subr.mxu0 0.0
        %573 = vmatpush1.msra.mxu0 %v496
        %574 = vmatprep.subr.mxu0 0.0
        %575 = vmatpush1.msra.mxu0 %v495
        %576 = vmatprep.subr.mxu0 0.0
        %577 = vmatpush1.msra.mxu0 %v494
        %578 = vmatprep.subr.mxu0 0.0
        %579 = vmatpush1.msra.mxu0 %v493
        %580 = vmatprep.subr.mxu0 0.0
        %581 = vmatpush2.msra.mxu0 %v524
        %582 = vmatprep.subr.mxu0 0.0
        %583 = vmatpush2.msra.mxu0 %v523
        %584 = vmatprep.subr.mxu0 0.0
        %585 = vmatpush2.msra.mxu0 %v522
        %586 = vmatprep.subr.mxu0 0.0
        %587 = vmatpush2.msra.mxu0 %v521
        %588 = vmatprep.subr.mxu0 0.0
        %589 = vmatpush2.msra.mxu0 %v520
        %590 = vmatprep.subr.mxu0 0.0
        %591 = vmatpush2.msra.mxu0 %v519
        %592 = vmatprep.subr.mxu0 0.0
        %593 = vmatpush2.msra.mxu0 %v518
        %594 = vmatprep.subr.mxu0 0.0
        %595 = vmatpush2.msra.mxu0 %v517
        %596 = vmatprep.subr.mxu0 0.0
        %597 = vmatpush2.msra.mxu0 %v516
        %598 = vmatprep.subr.mxu0 0.0
        %599 = vmatpush2.msra.mxu0 %v515
        %600 = vmatprep.subr.mxu0 0.0
        %601 = vmatpush2.msra.mxu0 %v514
        %602 = vmatprep.subr.mxu0 0.0
        %603 = vmatpush2.msra.mxu0 %v513
        %604 = vmatprep.subr.mxu0 0.0
        %605 = vmatpush2.msra.mxu0 %v512
        %606 = vmatprep.subr.mxu0 0.0
        %607 = vmatpush2.msra.mxu0 %v511
        %608 = vmatprep.subr.mxu0 0.0
        %609 = vmatpush2.msra.mxu0 %v510
        %610 = vmatprep.subr.mxu0 0.0
        %611 = vmatpush2.msra.mxu0 %v509
        %612 = vmatprep.mubr.f32.mxu0 %v475
        %613 = vmatmul.mubr.f32.gmra.mxu0 %v485
        %v614 = vpop.f32.mrf.mxu0
        %v615 = vadd.f32 %v546, %v614
        %v616 = vpop.f32.mrf.mxu0
        %617 = vmatprep.mubr.f32.mxu0 %v476
        %618 = vmatmul.mubr.f32.gmra.mxu0 %v482
        %v619 = vpop.f32.mrf.mxu0
        %v620 = vadd.f32 %v546, %v619
        %v621 = vpop.f32.mrf.mxu0
        %622 = vdwg.mxu0
        %623 = vmatprep.subr.mxu0 0.0
        %624 = vmatpush1.msra.mxu0 %v540
        %625 = vmatprep.subr.mxu0 0.0
        %626 = vmatpush1.msra.mxu0 %v539
        %627 = vmatprep.subr.mxu0 0.0
        %628 = vmatpush1.msra.mxu0 %v538
        %629 = vmatprep.subr.mxu0 0.0
        %630 = vmatpush1.msra.mxu0 %v537
        %631 = vmatprep.subr.mxu0 0.0
        %632 = vmatpush1.msra.mxu0 %v536
        %633 = vmatprep.subr.mxu0 0.0
        %634 = vmatpush1.msra.mxu0 %v535
        %635 = vmatprep.subr.mxu0 0.0
        %636 = vmatpush1.msra.mxu0 %v534
        %637 = vmatprep.subr.mxu0 0.0
        %638 = vmatpush1.msra.mxu0 %v533
        %639 = vmatprep.subr.mxu0 0.0
        %640 = vmatpush1.msra.mxu0 %v532
        %641 = vmatprep.subr.mxu0 0.0
        %642 = vmatpush1.msra.mxu0 %v531
        %643 = vmatprep.subr.mxu0 0.0
        %644 = vmatpush1.msra.mxu0 %v530
        %645 = vmatprep.subr.mxu0 0.0
        %646 = vmatpush1.msra.mxu0 %v529
        %647 = vmatprep.subr.mxu0 0.0
        %648 = vmatpush1.msra.mxu0 %v528
        %649 = vmatprep.subr.mxu0 0.0
        %650 = vmatpush1.msra.mxu0 %v527
        %651 = vmatprep.subr.mxu0 0.0
        %652 = vmatpush1.msra.mxu0 %v526
        %653 = vmatprep.subr.mxu0 0.0
        %654 = vmatpush1.msra.mxu0 %v525
        %655 = vmatprep.subr.mxu0 0.0
        %656 = vmatpush2.msra.mxu0 0.0
        %657 = vmatprep.subr.mxu0 0.0
        %658 = vmatpush2.msra.mxu0 0.0
        %659 = vmatprep.subr.mxu0 0.0
        %660 = vmatpush2.msra.mxu0 0.0
        %661 = vmatprep.subr.mxu0 0.0
        %662 = vmatpush2.msra.mxu0 0.0
        %663 = vmatprep.subr.mxu0 0.0
        %664 = vmatpush2.msra.mxu0 0.0
        %665 = vmatprep.subr.mxu0 0.0
        %666 = vmatpush2.msra.mxu0 0.0
        %667 = vmatprep.subr.mxu0 0.0
        %668 = vmatpush2.msra.mxu0 0.0
        %669 = vmatprep.subr.mxu0 0.0
        %670 = vmatpush2.msra.mxu0 0.0
        %671 = vmatprep.subr.mxu0 0.0
        %672 = vmatpush2.msra.mxu0 0.0
        %673 = vmatprep.subr.mxu0 0.0
        %674 = vmatpush2.msra.mxu0 0.0
        %675 = vmatprep.subr.mxu0 0.0
        %676 = vmatpush2.msra.mxu0 0.0
        %677 = vmatprep.subr.mxu0 0.0
        %678 = vmatpush2.msra.mxu0 0.0
        %679 = vmatprep.subr.mxu0 0.0
        %680 = vmatpush2.msra.mxu0 0.0
        %681 = vmatprep.subr.mxu0 0.0
        %682 = vmatpush2.msra.mxu0 0.0
        %683 = vmatprep.subr.mxu0 0.0
        %684 = vmatpush2.msra.mxu0 0.0
        %685 = vmatprep.subr.mxu0 0.0
        %686 = vmatpush2.msra.mxu0 0.0
        %687 = vmatprep.mubr.f32.mxu0 0.0
        %688 = vmatmul.mubr.f32.gmra.mxu0 %v489
        %v689 = vpop.f32.mrf.mxu0
        %v690 = vadd.f32 %v615, %v689
        %v691 = vpop.f32.mrf.mxu0
        %692 = vmatprep.mubr.f32.mxu0 0.0
        %693 = vmatmul.mubr.f32.gmra.mxu0 %v492
        %v694 = vpop.f32.mrf.mxu0
        %v695 = vadd.f32 %v620, %v694
        %v696 = vpop.f32.mrf.mxu0
        %697 = vdwg.mxu0
        %v698 = vmax.f32 %v690, 0.0
        %v699 = vmax.f32 %v695, 0.0
        %v700 = vld [vmem:[%s4] sm:$0x1]
        %v701 = vld [vmem:[%s5] sm:$0x1]
        %702 = vadd.xlane.f32.xlu0 %v698
        %v703 = vpop.xlane.xlu0 %702
        %704 = vadd.xlane.f32.xlu0 %v699
        %v705 = vpop.xlane.xlu0 %704
        %v706 = vrcp.pop 128.0
        %v707 = vmul.f32 %v703, %v706
        %v708 = vmul.f32 %v705, %v706
        %v709 = vmul.f32 %v698, %v698
        %v710 = vmul.f32 %v699, %v699
        %711 = vadd.xlane.f32.xlu0 %v709
        %v712 = vpop.xlane.xlu0 %711
        %713 = vadd.xlane.f32.xlu0 %v710
        %v714 = vpop.xlane.xlu0 %713
        %v715 = vmul.f32 %v712, %v706
        %v716 = vmul.f32 %v714, %v706
        %v717 = vmul.f32 %v707, %v707
        %v718 = vmul.f32 %v708, %v708
        %v719 = vsub.f32 %v715, %v717
        %v720 = vsub.f32 %v716, %v718
        %v721 = vsub.f32 %v698, %v707
        %v722 = vsub.f32 %v699, %v708
        %v723 = vadd.f32 %v719, 1e-05
        %v724 = vadd.f32 %v720, 1e-05
        %v725 = vrsqrt.pop %v723
        %v726 = vrsqrt.pop %v724
        %v727 = vmul.f32 %v721, %v725
        %v728 = vmul.f32 %v722, %v726
        %v730 = vlaneseq
        %v731 = vshrl.u32 %v730, 7
        %v732 = vsub.s32 0, %v731
        %v733 = vrot.slane %v700, %v732
        %v735 = vmul.f32 %v727, %v733
        %v736 = vmul.f32 %v728, %v733
        %v738 = vlaneseq
        %v739 = vshrl.u32 %v738, 7
        %v740 = vsub.s32 0, %v739
        %v741 = vrot.slane %v701, %v740
        %v743 = vadd.f32 %v735, %v741
        %v744 = vadd.f32 %v736, %v741
        %v747 = vrot.slane %v743, 7
        %v748 = vrot.slane %v744, 7
        %v749 = vsel %vm479, %v747, %v748
        %v752 = vsel %vm479, 0.0, %v747
        %v753 = vrot.slane %v743, 1
        %v754 = vrot.slane %v744, 1
        %v755 = vsel %vm486, %v753, %v754
        %v758 = vsel %vm486, %v754, 0.0
        %v759 = vld [vmem:[#allocation8] sm:$0xff]
        %v760 = vld [vmem:[#allocation8 + $0x8] sm:$0xff]
        %v761 = vld [vmem:[#allocation8 + $0x10] sm:$0xff]
        %v762 = vld [vmem:[#allocation8 + $0x18] sm:$0xff]
        %v763 = vld [vmem:[#allocation8 + $0x20] sm:$0xff]
        %v764 = vld [vmem:[#allocation8 + $0x28] sm:$0xff]
        %v765 = vld [vmem:[#allocation8 + $0x30] sm:$0xff]
        %v766 = vld [vmem:[#allocation8 + $0x38] sm:$0xff]
        %v767 = vld [vmem:[#allocation8 + $0x40] sm:$0xff]
        %v768 = vld [vmem:[#allocation8 + $0x48] sm:$0xff]
        %v769 = vld [vmem:[#allocation8 + $0x50] sm:$0xff]
        %v770 = vld [vmem:[#allocation8 + $0x58] sm:$0xff]
        %v771 = vld [vmem:[#allocation8 + $0x60] sm:$0xff]
        %v772 = vld [vmem:[#allocation8 + $0x68] sm:$0xff]
        %v773 = vld [vmem:[#allocation8 + $0x70] sm:$0xff]
        %v774 = vld [vmem:[#allocation8 + $0x78] sm:$0xff]
        %v775 = vld [vmem:[#allocation8 + $0x80] sm:$0xff]
        %v776 = vld [vmem:[#allocation8 + $0x88] sm:$0xff]
        %v777 = vld [vmem:[#allocation8 + $0x90] sm:$0xff]
        %v778 = vld [vmem:[#allocation8 + $0x98] sm:$0xff]
        %v779 = vld [vmem:[#allocation8 + $0xa0] sm:$0xff]
        %v780 = vld [vmem:[#allocation8 + $0xa8] sm:$0xff]
        %v781 = vld [vmem:[#allocation8 + $0xb0] sm:$0xff]
        %v782 = vld [vmem:[#allocation8 + $0xb8] sm:$0xff]
        %v783 = vld [vmem:[#allocation8 + $0xc0] sm:$0xff]
        %v784 = vld [vmem:[#allocation8 + $0xc8] sm:$0xff]
        %v785 = vld [vmem:[#allocation8 + $0xd0] sm:$0xff]
        %v786 = vld [vmem:[#allocation8 + $0xd8] sm:$0xff]
        %v787 = vld [vmem:[#allocation8 + $0xe0] sm:$0xff]
        %v788 = vld [vmem:[#allocation8 + $0xe8] sm:$0xff]
        %v789 = vld [vmem:[#allocation8 + $0xf0] sm:$0xff]
        %v790 = vld [vmem:[#allocation8 + $0xf8] sm:$0xff]
        %v791 = vld [vmem:[#allocation8 + $0x100] sm:$0xff]
        %v792 = vld [vmem:[#allocation8 + $0x108] sm:$0xff]
        %v793 = vld [vmem:[#allocation8 + $0x110] sm:$0xff]
        %v794 = vld [vmem:[#allocation8 + $0x118] sm:$0xff]
        %v795 = vld [vmem:[#allocation8 + $0x120] sm:$0xff]
        %v796 = vld [vmem:[#allocation8 + $0x128] sm:$0xff]
        %v797 = vld [vmem:[#allocation8 + $0x130] sm:$0xff]
        %v798 = vld [vmem:[#allocation8 + $0x138] sm:$0xff]
        %v799 = vld [vmem:[#allocation8 + $0x140] sm:$0xff]
        %v800 = vld [vmem:[#allocation8 + $0x148] sm:$0xff]
        %v801 = vld [vmem:[#allocation8 + $0x150] sm:$0xff]
        %v802 = vld [vmem:[#allocation8 + $0x158] sm:$0xff]
        %v803 = vld [vmem:[#allocation8 + $0x160] sm:$0xff]
        %v804 = vld [vmem:[#allocation8 + $0x168] sm:$0xff]
        %v805 = vld [vmem:[#allocation8 + $0x170] sm:$0xff]
        %v806 = vld [vmem:[#allocation8 + $0x178] sm:$0xff]
        %v807 = vld [vmem:[%s7] sm:$0x1]
        %v809 = vlaneseq
        %v810 = vshrl.u32 %v809, 7
        %v811 = vsub.s32 0, %v810
        %v812 = vrot.slane %v807, %v811
        %814 = vmatprep.subr.mxu0 0.0
        %815 = vmatpush1.msra.mxu0 %v774
        %816 = vmatprep.subr.mxu0 0.0
        %817 = vmatpush1.msra.mxu0 %v773
        %818 = vmatprep.subr.mxu0 0.0
        %819 = vmatpush1.msra.mxu0 %v772
        %820 = vmatprep.subr.mxu0 0.0
        %821 = vmatpush1.msra.mxu0 %v771
        %822 = vmatprep.subr.mxu0 0.0
        %823 = vmatpush1.msra.mxu0 %v770
        %824 = vmatprep.subr.mxu0 0.0
        %825 = vmatpush1.msra.mxu0 %v769
        %826 = vmatprep.subr.mxu0 0.0
        %827 = vmatpush1.msra.mxu0 %v768
        %828 = vmatprep.subr.mxu0 0.0
        %829 = vmatpush1.msra.mxu0 %v767
        %830 = vmatprep.subr.mxu0 0.0
        %831 = vmatpush1.msra.mxu0 %v766
        %832 = vmatprep.subr.mxu0 0.0
        %833 = vmatpush1.msra.mxu0 %v765
        %834 = vmatprep.subr.mxu0 0.0
        %835 = vmatpush1.msra.mxu0 %v764
        %836 = vmatprep.subr.mxu0 0.0
        %837 = vmatpush1.msra.mxu0 %v763
        %838 = vmatprep.subr.mxu0 0.0
        %839 = vmatpush1.msra.mxu0 %v762
        %840 = vmatprep.subr.mxu0 0.0
        %841 = vmatpush1.msra.mxu0 %v761
        %842 = vmatprep.subr.mxu0 0.0
        %843 = vmatpush1.msra.mxu0 %v760
        %844 = vmatprep.subr.mxu0 0.0
        %845 = vmatpush1.msra.mxu0 %v759
        %846 = vmatprep.subr.mxu0 0.0
        %847 = vmatpush2.msra.mxu0 %v790
        %848 = vmatprep.subr.mxu0 0.0
        %849 = vmatpush2.msra.mxu0 %v789
        %850 = vmatprep.subr.mxu0 0.0
        %851 = vmatpush2.msra.mxu0 %v788
        %852 = vmatprep.subr.mxu0 0.0
        %853 = vmatpush2.msra.mxu0 %v787
        %854 = vmatprep.subr.mxu0 0.0
        %855 = vmatpush2.msra.mxu0 %v786
        %856 = vmatprep.subr.mxu0 0.0
        %857 = vmatpush2.msra.mxu0 %v785
        %858 = vmatprep.subr.mxu0 0.0
        %859 = vmatpush2.msra.mxu0 %v784
        %860 = vmatprep.subr.mxu0 0.0
        %861 = vmatpush2.msra.mxu0 %v783
        %862 = vmatprep.subr.mxu0 0.0
        %863 = vmatpush2.msra.mxu0 %v782
        %864 = vmatprep.subr.mxu0 0.0
        %865 = vmatpush2.msra.mxu0 %v781
        %866 = vmatprep.subr.mxu0 0.0
        %867 = vmatpush2.msra.mxu0 %v780
        %868 = vmatprep.subr.mxu0 0.0
        %869 = vmatpush2.msra.mxu0 %v779
        %870 = vmatprep.subr.mxu0 0.0
        %871 = vmatpush2.msra.mxu0 %v778
        %872 = vmatprep.subr.mxu0 0.0
        %873 = vmatpush2.msra.mxu0 %v777
        %874 = vmatprep.subr.mxu0 0.0
        %875 = vmatpush2.msra.mxu0 %v776
        %876 = vmatprep.subr.mxu0 0.0
        %877 = vmatpush2.msra.mxu0 %v775
        %878 = vmatprep.mubr.f32.mxu0 %v743
        %879 = vmatmul.mubr.f32.gmra.mxu0 %v752
        %v880 = vpop.f32.mrf.mxu0
        %v881 = vadd.f32 %v812, %v880
        %v882 = vpop.f32.mrf.mxu0
        %883 = vmatprep.mubr.f32.mxu0 %v744
        %884 = vmatmul.mubr.f32.gmra.mxu0 %v749
        %v885 = vpop.f32.mrf.mxu0
        %v886 = vadd.f32 %v812, %v885
        %v887 = vpop.f32.mrf.mxu0
        %888 = vdwg.mxu0
        %889 = vmatprep.subr.mxu0 0.0
        %890 = vmatpush1.msra.mxu0 %v806
        %891 = vmatprep.subr.mxu0 0.0
        %892 = vmatpush1.msra.mxu0 %v805
        %893 = vmatprep.subr.mxu0 0.0
        %894 = vmatpush1.msra.mxu0 %v804
        %895 = vmatprep.subr.mxu0 0.0
        %896 = vmatpush1.msra.mxu0 %v803
        %897 = vmatprep.subr.mxu0 0.0
        %898 = vmatpush1.msra.mxu0 %v802
        %899 = vmatprep.subr.mxu0 0.0
        %900 = vmatpush1.msra.mxu0 %v801
        %901 = vmatprep.subr.mxu0 0.0
        %902 = vmatpush1.msra.mxu0 %v800
        %903 = vmatprep.subr.mxu0 0.0
        %904 = vmatpush1.msra.mxu0 %v799
        %905 = vmatprep.subr.mxu0 0.0
        %906 = vmatpush1.msra.mxu0 %v798
        %907 = vmatprep.subr.mxu0 0.0
        %908 = vmatpush1.msra.mxu0 %v797
        %909 = vmatprep.subr.mxu0 0.0
        %910 = vmatpush1.msra.mxu0 %v796
        %911 = vmatprep.subr.mxu0 0.0
        %912 = vmatpush1.msra.mxu0 %v795
        %913 = vmatprep.subr.mxu0 0.0
        %914 = vmatpush1.msra.mxu0 %v794
        %915 = vmatprep.subr.mxu0 0.0
        %916 = vmatpush1.msra.mxu0 %v793
        %917 = vmatprep.subr.mxu0 0.0
        %918 = vmatpush1.msra.mxu0 %v792
        %919 = vmatprep.subr.mxu0 0.0
        %920 = vmatpush1.msra.mxu0 %v791
        %921 = vmatprep.subr.mxu0 0.0
        %922 = vmatpush2.msra.mxu0 0.0
        %923 = vmatprep.subr.mxu0 0.0
        %924 = vmatpush2.msra.mxu0 0.0
        %925 = vmatprep.subr.mxu0 0.0
        %926 = vmatpush2.msra.mxu0 0.0
        %927 = vmatprep.subr.mxu0 0.0
        %928 = vmatpush2.msra.mxu0 0.0
        %929 = vmatprep.subr.mxu0 0.0
        %930 = vmatpush2.msra.mxu0 0.0
        %931 = vmatprep.subr.mxu0 0.0
        %932 = vmatpush2.msra.mxu0 0.0
        %933 = vmatprep.subr.mxu0 0.0
        %934 = vmatpush2.msra.mxu0 0.0
        %935 = vmatprep.subr.mxu0 0.0
        %936 = vmatpush2.msra.mxu0 0.0
        %937 = vmatprep.subr.mxu0 0.0
        %938 = vmatpush2.msra.mxu0 0.0
        %939 = vmatprep.subr.mxu0 0.0
        %940 = vmatpush2.msra.mxu0 0.0
        %941 = vmatprep.subr.mxu0 0.0
        %942 = vmatpush2.msra.mxu0 0.0
        %943 = vmatprep.subr.mxu0 0.0
        %944 = vmatpush2.msra.mxu0 0.0
        %945 = vmatprep.subr.mxu0 0.0
        %946 = vmatpush2.msra.mxu0 0.0
        %947 = vmatprep.subr.mxu0 0.0
        %948 = vmatpush2.msra.mxu0 0.0
        %949 = vmatprep.subr.mxu0 0.0
        %950 = vmatpush2.msra.mxu0 0.0
        %951 = vmatprep.subr.mxu0 0.0
        %952 = vmatpush2.msra.mxu0 0.0
        %953 = vmatprep.mubr.f32.mxu0 0.0
        %954 = vmatmul.mubr.f32.gmra.mxu0 %v755
        %v955 = vpop.f32.mrf.mxu0
        %v956 = vadd.f32 %v881, %v955
        %v957 = vpop.f32.mrf.mxu0
        %958 = vmatprep.mubr.f32.mxu0 0.0
        %959 = vmatmul.mubr.f32.gmra.mxu0 %v758
        %v960 = vpop.f32.mrf.mxu0
        %v961 = vadd.f32 %v886, %v960
        %v962 = vpop.f32.mrf.mxu0
        %963 = vdwg.mxu0
        %v964 = vmax.f32 %v956, 0.0
        %v965 = vmax.f32 %v961, 0.0
        %v966 = vld [vmem:[%s8] sm:$0x1]
        %v967 = vld [vmem:[%s9] sm:$0x1]
        %968 = vadd.xlane.f32.xlu0 %v964
        %v969 = vpop.xlane.xlu0 %968
        %970 = vadd.xlane.f32.xlu0 %v965
        %v971 = vpop.xlane.xlu0 %970
        %v972 = vmul.f32 %v969, %v706
        %v973 = vmul.f32 %v971, %v706
        %v974 = vmul.f32 %v964, %v964
        %v975 = vmul.f32 %v965, %v965
        %976 = vadd.xlane.f32.xlu0 %v974
        %v977 = vpop.xlane.xlu0 %976
        %978 = vadd.xlane.f32.xlu0 %v975
        %v979 = vpop.xlane.xlu0 %978
        %v980 = vmul.f32 %v977, %v706
        %v981 = vmul.f32 %v979, %v706
        %v982 = vmul.f32 %v972, %v972
        %v983 = vmul.f32 %v973, %v973
        %v984 = vsub.f32 %v980, %v982
        %v985 = vsub.f32 %v981, %v983
        %v986 = vsub.f32 %v964, %v972
        %v987 = vsub.f32 %v965, %v973
        %v988 = vadd.f32 %v984, 1e-05
        %v989 = vadd.f32 %v985, 1e-05
        %v990 = vrsqrt.pop %v988
        %v991 = vrsqrt.pop %v989
        %v992 = vmul.f32 %v986, %v990
        %v993 = vmul.f32 %v987, %v991
        %v995 = vlaneseq
        %v996 = vshrl.u32 %v995, 7
        %v997 = vsub.s32 0, %v996
        %v998 = vrot.slane %v966, %v997
        %v1000 = vmul.f32 %v992, %v998
        %v1001 = vmul.f32 %v993, %v998
        %v1003 = vlaneseq
        %v1004 = vshrl.u32 %v1003, 7
        %v1005 = vsub.s32 0, %v1004
        %v1006 = vrot.slane %v967, %v1005
        %v1008 = vadd.f32 %v1000, %v1006
        %v1009 = vadd.f32 %v1001, %v1006
        %v1010 = vld [vmem:[%s10] sm:$0x1]
        %v1012 = vlaneseq
        %v1013 = vshrl.u32 %v1012, 7
        %v1014 = vsub.s32 0, %v1013
        %v1015 = vrot.slane %v1010, %v1014
        %v1017 = vmul.f32 %v1008, %v1015
        %v1018 = vmul.f32 %v1009, %v1015
        %1019 = vadd.xlane.f32.xlu0 %v1017
        %v1020 = vpop.xlane.xlu0 %1019
        %1021 = vadd.xlane.f32.xlu0 %v1018
        %v1022 = vpop.xlane.xlu0 %1021
        %s1023 = sld [smem:[#allocation2]]
        %v1024 = vstv %s1023
        %v1025 = vadd.f32 %v1020, %v1024
        %v1026 = vadd.f32 %v1022, %v1024
        %v1027 = vld [vmem:[%s474] sm:$0x1]
        %vm1028 = vcmp.ne.s32.totalorder %v1027, 0
        %v1031 = vlaneseq
        %v1032 = vshrl.u32 %v1031, 7
        %v1033 = vsub.s32 0, %v1032
        %v1034 = vrot.slane %v1025, %v1033
        %v1035 = vlaneseq
        %v1036 = vshrl.u32 %v1035, 7
        %v1037 = vsub.s32 1, %v1036
        %v1038 = vrot.slane %v1025, %v1037
        %v1039 = vlaneseq
        %v1040 = vshrl.u32 %v1039, 7
        %v1041 = vsub.s32 2, %v1040
        %v1042 = vrot.slane %v1025, %v1041
        %v1043 = vlaneseq
        %v1044 = vshrl.u32 %v1043, 7
        %v1045 = vsub.s32 3, %v1044
        %v1046 = vrot.slane %v1025, %v1045
        %v1047 = vlaneseq
        %v1048 = vshrl.u32 %v1047, 7
        %v1049 = vsub.s32 4, %v1048
        %v1050 = vrot.slane %v1025, %v1049
        %v1051 = vlaneseq
        %v1052 = vshrl.u32 %v1051, 7
        %v1053 = vsub.s32 5, %v1052
        %v1054 = vrot.slane %v1025, %v1053
        %v1055 = vlaneseq
        %v1056 = vshrl.u32 %v1055, 7
        %v1057 = vsub.s32 6, %v1056
        %v1058 = vrot.slane %v1025, %v1057
        %v1059 = vlaneseq
        %v1060 = vshrl.u32 %v1059, 7
        %v1061 = vsub.s32 7, %v1060
        %v1062 = vrot.slane %v1025, %v1061
        %v1063 = vlaneseq
        %v1064 = vshrl.u32 %v1063, 7
        %v1065 = vsub.s32 0, %v1064
        %v1066 = vrot.slane %v1026, %v1065
        %v1067 = vlaneseq
        %v1068 = vshrl.u32 %v1067, 7
        %v1069 = vsub.s32 1, %v1068
        %v1070 = vrot.slane %v1026, %v1069
        %v1071 = vlaneseq
        %v1072 = vshrl.u32 %v1071, 7
        %v1073 = vsub.s32 2, %v1072
        %v1074 = vrot.slane %v1026, %v1073
        %v1075 = vlaneseq
        %v1076 = vshrl.u32 %v1075, 7
        %v1077 = vsub.s32 3, %v1076
        %v1078 = vrot.slane %v1026, %v1077
        %v1079 = vlaneseq
        %v1080 = vshrl.u32 %v1079, 7
        %v1081 = vsub.s32 4, %v1080
        %v1082 = vrot.slane %v1026, %v1081
        %v1083 = vlaneseq
        %v1084 = vshrl.u32 %v1083, 7
        %v1085 = vsub.s32 5, %v1084
        %v1086 = vrot.slane %v1026, %v1085
        %v1087 = vlaneseq
        %v1088 = vshrl.u32 %v1087, 7
        %v1089 = vsub.s32 6, %v1088
        %v1090 = vrot.slane %v1026, %v1089
        %v1091 = vlaneseq
        %v1092 = vshrl.u32 %v1091, 7
        %v1093 = vsub.s32 7, %v1092
        %v1094 = vrot.slane %v1026, %v1093
        %v1095 = vcombine.low %v1034, %v1038
        %v1096 = vcombine.low %v1042, %v1046
        %v1097 = vcombine.low %v1050, %v1054
        %v1098 = vcombine.low %v1058, %v1062
        %v1100 = vunpack.c.l.s4 1966171168
        %v1101 = vunpack.c.0.s8 %v1100
        %v1102 = vlaneseq
        %v1103 = vshrl.u32 %v1102, 7
        %v1104 = vsub.s32 %v1101, %v1103
        %v1105 = vrot.slane %v1095, %v1104
        %v1107 = vunpack.c.l.s4 1966171168
        %v1108 = vunpack.c.0.s8 %v1107
        %v1109 = vlaneseq
        %v1110 = vshrl.u32 %v1109, 7
        %v1111 = vsub.s32 %v1108, %v1110
        %v1112 = vrot.slane %v1096, %v1111
        %v1114 = vunpack.c.l.s4 1966171168
        %v1115 = vunpack.c.0.s8 %v1114
        %v1116 = vlaneseq
        %v1117 = vshrl.u32 %v1116, 7
        %v1118 = vsub.s32 %v1115, %v1117
        %v1119 = vrot.slane %v1097, %v1118
        %v1121 = vunpack.c.l.s4 1966171168
        %v1122 = vunpack.c.0.s8 %v1121
        %v1123 = vlaneseq
        %v1124 = vshrl.u32 %v1123, 7
        %v1125 = vsub.s32 %v1122, %v1124
        %v1126 = vrot.slane %v1098, %v1125
        %v1127 = vcombine.low %v1105, %v1112
        %v1128 = vcombine.low %v1119, %v1126
        %v1130 = vunpack.c.l.s4 1966171168
        %v1131 = vunpack.c.0.s8 %v1130
        %v1132 = vlaneseq
        %v1133 = vshrl.u32 %v1132, 7
        %v1134 = vsub.s32 %v1131, %v1133
        %v1135 = vrot.slane %v1127, %v1134
        %v1137 = vunpack.c.l.s4 1966171168
        %v1138 = vunpack.c.0.s8 %v1137
        %v1139 = vlaneseq
        %v1140 = vshrl.u32 %v1139, 7
        %v1141 = vsub.s32 %v1138, %v1140
        %v1142 = vrot.slane %v1128, %v1141
        %v1143 = vcombine.low %v1135, %v1142
        %v1144 = vcombine.low %v1066, %v1070
        %v1145 = vcombine.low %v1074, %v1078
        %v1146 = vcombine.low %v1082, %v1086
        %v1147 = vcombine.low %v1090, %v1094
        %v1149 = vunpack.c.l.s4 1966171168
        %v1150 = vunpack.c.0.s8 %v1149
        %v1151 = vlaneseq
        %v1152 = vshrl.u32 %v1151, 7
        %v1153 = vsub.s32 %v1150, %v1152
        %v1154 = vrot.slane %v1144, %v1153
        %v1156 = vunpack.c.l.s4 1966171168
        %v1157 = vunpack.c.0.s8 %v1156
        %v1158 = vlaneseq
        %v1159 = vshrl.u32 %v1158, 7
        %v1160 = vsub.s32 %v1157, %v1159
        %v1161 = vrot.slane %v1145, %v1160
        %v1163 = vunpack.c.l.s4 1966171168
        %v1164 = vunpack.c.0.s8 %v1163
        %v1165 = vlaneseq
        %v1166 = vshrl.u32 %v1165, 7
        %v1167 = vsub.s32 %v1164, %v1166
        %v1168 = vrot.slane %v1146, %v1167
        %v1170 = vunpack.c.l.s4 1966171168
        %v1171 = vunpack.c.0.s8 %v1170
        %v1172 = vlaneseq
        %v1173 = vshrl.u32 %v1172, 7
        %v1174 = vsub.s32 %v1171, %v1173
        %v1175 = vrot.slane %v1147, %v1174
        %v1176 = vcombine.low %v1154, %v1161
        %v1177 = vcombine.low %v1168, %v1175
        %v1179 = vunpack.c.l.s4 1966171168
        %v1180 = vunpack.c.0.s8 %v1179
        %v1181 = vlaneseq
        %v1182 = vshrl.u32 %v1181, 7
        %v1183 = vsub.s32 %v1180, %v1182
        %v1184 = vrot.slane %v1176, %v1183
        %v1186 = vunpack.c.l.s4 1966171168
        %v1187 = vunpack.c.0.s8 %v1186
        %v1188 = vlaneseq
        %v1189 = vshrl.u32 %v1188, 7
        %v1190 = vsub.s32 %v1187, %v1189
        %v1191 = vrot.slane %v1177, %v1190
        %v1192 = vcombine.low %v1184, %v1191
        %1193 = vset.pattern.permute.xlu0 0
        %1194 = vperm.xlu0 %1193, %v1143
        %v1195 = vpop.permute.xlu0 %1194
        %1196 = vset.pattern.permute.xlu0 0
        %1197 = vperm.xlu0 %1196, %v1192
        %v1198 = vpop.permute.xlu0 %1197
        %v1199 = vlaneseq
        %v1200 = vand.u32 %v1199, 127
        %v1201 = vlaneseq
        %v1202 = vshrl.u32 %v1201, 7
        %v1203 = vsub.s32 %v1200, %v1202
        %v1204 = vrot.slane %v1195, %v1203
        %v1205 = vadd.s32 %v1200, 4294967288
        %v1206 = vlaneseq
        %v1207 = vshrl.u32 %v1206, 7
        %v1208 = vsub.s32 %v1205, %v1207
        %v1209 = vrot.slane %v1198, %v1208
        %vm1210 = vcmask 130112
        %v1211 = vsel %vm1210, %v1209, %v1204
        %v1213 = vunpack.c.l.s4 1966171168
        %v1214 = vunpack.c.0.s8 %v1213
        %v1215 = vlaneseq
        %v1216 = vshrl.u32 %v1215, 7
        %v1217 = vsub.s32 %v1214, %v1216
        %v1218 = vrot.slane %v1211, %v1217
        %v1220 = vunpack.c.l.s4 1966171168
        %v1221 = vunpack.c.0.s8 %v1220
        %v1222 = vlaneseq
        %v1223 = vshrl.u32 %v1222, 7
        %v1224 = vsub.s32 %v1221, %v1223
        %v1225 = vrot.slane %v1218, %v1224
        %v1227 = vsel %vm1028, 0.0, %v1225
        %vm1228 = vcmask 122880
        %1229 = vst.msk [vmem:[%s471] sm:$0x1] %vm1228, %v1227
        %s1230 = sand.u32 %s301, 1
        %s1231 = scalar_lea.sflag [#allocation5], %s1230
        %s1232 = sand.u32 %s301, 1
        %s1233 = scalar_lea.vmem [#allocation9], %s1232
        // Predicated region
        $region81: #{tpu_custom_call.1} parent=67 // pred_check
          %p1234 = pneg %p311
        $region82: #{tpu_custom_call.1} parent=67 // pred_check_branch
          %1236 = sbr.rel (%p1234) target = $region84
        $region83: #{tpu_custom_call.1} parent=67 // pred_region
          %s1238 = ssub.s32 16, 16
          %1239 = vsyncadd %s1231, %s1238
          %s1240 = smul.addr %s31, 16
          %s1241 = scalar_lea.hbm %s12, %s1240
          %s1243 = sshll.u32 %s1233, 4
          %s1244 = int_to_ptr.vmem [resolvable:$true] %s1243
          %1246 = dma.vmem_to_hbm [thread:$0]  %s1244, 16, %s1241, %s1231
        $region84: #{tpu_custom_call.1} parent=67 // pred_fallthru
          _
      $region68: #{tpu_custom_call.1} parent=5 // pred_fallthru
        _
      %p1247 = scmp.le.s32.totalorder 2, %s26
      // Predicated region
      $region85: #{tpu_custom_call.1} parent=5 // pred_check
        %p1248 = pneg %p1247
      $region86: #{tpu_custom_call.1} parent=5 // pred_check_branch
        %1250 = sbr.rel (%p1248) target = $region88
      $region87: #{tpu_custom_call.1} parent=5 // pred_region
        %s1251 = ssub.s32 %s26, 2
        // Predicated region
        $region89: #{tpu_custom_call.1} parent=87 // pred_check
          %p1252 = pneg %p317
        $region90: #{tpu_custom_call.1} parent=87 // pred_check_branch
          %1254 = sbr.rel (%p1252) target = $region92
        $region91: #{tpu_custom_call.1} parent=87 // pred_region
          %s1255 = sand.u32 %s302, 1
          %s1256 = scalar_lea.sflag [#allocation5], %s1255
          %s1257 = sand.u32 %s302, 1
          %s1258 = scalar_lea.vmem [#allocation9], %s1257
          %1259 = dma.done %s1256, 16
        $region92: #{tpu_custom_call.1} parent=87 // pred_fallthru
          _
      $region88: #{tpu_custom_call.1} parent=5 // pred_fallthru
        _
    $region6: #{tpu_custom_call.1} parent=1 // loop_footer
      %s30 = sadd.s32 1, %s26
    $region7: #{tpu_custom_call.1} parent=1 // loop_footer_branch
      %25 = sbr.rel target = $region3
    $region8: #{tpu_custom_call.1} parent=1 // loop_exit
      _
    %1260 = vsyncpa [#allocation4], 1
    %s1261 = scalar_lea.sflag [#allocation4], 1
    %1262 = vsyncpa %s1261, 1
    %1263 = vsyncpa [#allocation7], 1
    %1264 = vsyncpa [#allocation5], 1
    %s1265 = scalar_lea.sflag [#allocation5], 1
    %1266 = vsyncpa %s1265, 1

</llo_original>
